<compile_context>
chip_gen: v5e
topology: v5e:2x2
jax: 0.10.0
libtpu: 0.0.40
codegen_flags: <defaults>
</compile_context>

<pallas_src>
import math

import jax
import jax.numpy as jnp
from jax import lax
from jax.experimental import pallas as pl
from jax.experimental.pallas import tpu as pltpu

LN_EPS = 1e-5
_INV_SQRT2 = 1.0 / math.sqrt(2.0)


def _mlp_kernel(x_ref, g_ref, beta_ref, w1_ref, b1_ref, w2_ref, b2_ref,
                o_ref, xn_ref, acc_ref):
    """Grid = (row_tiles, hidden_tiles). Axis 1 (hidden) is the reduction axis:
    the second matmul accumulates into acc_ref across hidden chunks."""
    k = pl.program_id(1)

    @pl.when(k == 0)
    def _init():
        # LayerNorm in f32, computed once per row tile, cached in bf16 for the MXU.
        x = x_ref[...].astype(jnp.float32)
        mean = jnp.mean(x, axis=-1, keepdims=True)
        var = jnp.mean((x - mean) ** 2, axis=-1, keepdims=True)
        xn = (x - mean) * lax.rsqrt(var + LN_EPS)
        xn = xn * g_ref[...] + beta_ref[...]
        xn_ref[...] = xn.astype(xn_ref.dtype)
        acc_ref[...] = jnp.zeros_like(acc_ref)

    # Linear 1 chunk: (tm, dim) @ (dim, tk) -- bf16 MXU inputs, f32 accumulation.
    h = jnp.dot(xn_ref[...], w1_ref[...], preferred_element_type=jnp.float32)
    h = h + b1_ref[...]
    # Exact erf-based GELU (PyTorch nn.GELU default), kept in f32 on the VPU.
    h = 0.5 * h * (1.0 + lax.erf(h * _INV_SQRT2))
    # Linear 2 chunk: (tm, tk) @ (tk, dim), accumulated across hidden chunks.
    acc_ref[...] += jnp.dot(h.astype(w2_ref.dtype), w2_ref[...],
                            preferred_element_type=jnp.float32)

    @pl.when(k == pl.num_programs(1) - 1)
    def _finalize():
        o_ref[...] = (acc_ref[...] + b2_ref[...]).astype(o_ref.dtype)


def _round_up(x, m):
    return ((x + m - 1) // m) * m


def mlp_forward(x, gamma, beta, w1, b1, w2, b2, *, tm=256, tk=512):
    """x: (B, N, dim). w1: (dim, hidden), w2: (hidden, dim) (already transposed from
    PyTorch's (out, in) layout). Returns (B, N, dim) in x.dtype."""
    B, N, dim = x.shape
    hidden = w1.shape[1]
    M = B * N

    # Row tile: as large as possible (multiple of 16), padded token count divides evenly.
    tm_eff = min(tm, _round_up(M, 16))
    M_pad = _round_up(M, tm_eff)

    # Hidden tile: multiple of 128 so weight blocks are lane-aligned; fall back to the
    # full hidden dim if it doesn't divide evenly.
    tk_eff = tk if (hidden > tk and hidden % tk == 0) else hidden
    n_k = hidden // tk_eff

    x2 = x.reshape(M, dim)
    if M_pad != M:
        x2 = jnp.pad(x2, ((0, M_pad - M), (0, 0)))  # zero rows are LN-safe (finite)

    # Matmul operands in bf16 (MXU-native); LN/GELU math and biases stay f32.
    w1_b = w1.astype(jnp.bfloat16)
    w2_b = w2.astype(jnp.bfloat16)
    g2 = gamma.astype(jnp.float32).reshape(1, dim)
    be2 = beta.astype(jnp.float32).reshape(1, dim)
    b1_2 = b1.astype(jnp.float32).reshape(1, hidden)
    b2_2 = b2.astype(jnp.float32).reshape(1, dim)

    # VMEM budget: double-buffered blocks + scratch, with headroom, capped for v7x (64 MiB).
    block_bytes = (
        2 * tm_eff * dim * x2.dtype.itemsize        # x tiles (double-buffered)
        + 2 * tm_eff * dim * x.dtype.itemsize       # out tiles
        + 2 * dim * tk_eff * 2                      # w1 tiles (bf16)
        + 2 * tk_eff * dim * 2                      # w2 tiles (bf16)
        + 2 * (2 * dim + tk_eff + dim) * 4          # gamma/beta/b1/b2
        + tm_eff * dim * (2 + 4)                    # xn (bf16) + acc (f32) scratch
    )
    vmem_limit = int(min(max(2 * block_bytes, 32 * 1024 * 1024), 64 * 1024 * 1024))

    out = pl.pallas_call(
        _mlp_kernel,
        out_shape=jax.ShapeDtypeStruct((M_pad, dim), x.dtype),
        grid_spec=pltpu.PrefetchScalarGridSpec(
            num_scalar_prefetch=0,
            grid=(M_pad // tm_eff, n_k),
            in_specs=[
                pl.BlockSpec((tm_eff, dim), lambda i, k: (i, 0)),   # x tile
                pl.BlockSpec((1, dim), lambda i, k: (0, 0)),        # gamma
                pl.BlockSpec((1, dim), lambda i, k: (0, 0)),        # beta
                pl.BlockSpec((dim, tk_eff), lambda i, k: (0, k)),   # w1 hidden-chunk
                pl.BlockSpec((1, tk_eff), lambda i, k: (0, k)),     # b1 hidden-chunk
                pl.BlockSpec((tk_eff, dim), lambda i, k: (k, 0)),   # w2 hidden-chunk
                pl.BlockSpec((1, dim), lambda i, k: (0, 0)),        # b2
            ],
            out_specs=pl.BlockSpec((tm_eff, dim), lambda i, k: (i, 0)),
            scratch_shapes=[
                pltpu.VMEM((tm_eff, dim), jnp.bfloat16),   # cached LayerNorm output
                pltpu.VMEM((tm_eff, dim), jnp.float32),    # f32 output accumulator
            ],
        ),
        compiler_params=pltpu.CompilerParams(
            dimension_semantics=("parallel", "arbitrary"),
            vmem_limit_bytes=vmem_limit,
        ),
    )(x2, g2, be2, w1_b, b1_2, w2_b, b2_2)

    return out[:M].reshape(B, N, dim)


if __name__ == "__main__":
    # Small but TPU-friendly shapes: lane-dense dim (128) and two tokens-tiles worth of rows.
    B, N, dim, hidden = 2, 64, 128, 256

    key = jax.random.PRNGKey(0)
    kx, k1, k2, k3, k4 = jax.random.split(key, 5)

    x = jax.random.normal(kx, (B, N, dim), dtype=jnp.float32)

    # LayerNorm params (PyTorch default init: weight=1, bias=0)
    gamma = jnp.ones((dim,), jnp.float32)
    beta = jnp.zeros((dim,), jnp.float32)

    # Linear params (uniform init similar to PyTorch's kaiming-uniform bound), (in, out) layout.
    bound1 = 1.0 / math.sqrt(dim)
    w1 = jax.random.uniform(k1, (dim, hidden), jnp.float32, -bound1, bound1)
    b1 = jax.random.uniform(k2, (hidden,), jnp.float32, -bound1, bound1)
    bound2 = 1.0 / math.sqrt(hidden)
    w2 = jax.random.uniform(k3, (hidden, dim), jnp.float32, -bound2, bound2)
    b2 = jax.random.uniform(k4, (dim,), jnp.float32, -bound2, bound2)

    out = mlp_forward(x, gamma, beta, w1, b1, w2, b2)
    jax.block_until_ready(out)

    # Pure-JAX reference mirroring the kernel's dtype strategy
    # (f32 LN/GELU, bf16 MXU inputs, f32 accumulation).
    xf = x.astype(jnp.float32)
    mean = jnp.mean(xf, axis=-1, keepdims=True)
    var = jnp.mean((xf - mean) ** 2, axis=-1, keepdims=True)
    xn = (xf - mean) * lax.rsqrt(var + LN_EPS)
    xn = xn * gamma + beta
    h = jnp.dot(xn.reshape(-1, dim).astype(jnp.bfloat16), w1.astype(jnp.bfloat16),
                preferred_element_type=jnp.float32) + b1
    h = 0.5 * h * (1.0 + lax.erf(h / math.sqrt(2.0)))
    ref = jnp.dot(h.astype(jnp.bfloat16), w2.astype(jnp.bfloat16),
                  preferred_element_type=jnp.float32) + b2
    ref = ref.reshape(B, N, dim)

    assert out.shape == (B, N, dim)
    assert jnp.allclose(out, ref, atol=1e-2, rtol=1e-2), "mismatch vs reference"

    print("KERNEL_OK")
</pallas_src>

<mosaic_0001>
module attributes {stable_mosaic.version = 11 : i64} {
  func.func @_mlp_kernel(%arg0: i32, %arg1: i32, %arg2: memref<128x128xf32, #tpu.memory_space<vmem>>, %arg3: memref<1x128xf32, #tpu.memory_space<vmem>>, %arg4: memref<1x128xf32, #tpu.memory_space<vmem>>, %arg5: memref<128x256xbf16, #tpu.memory_space<vmem>>, %arg6: memref<1x256xf32, #tpu.memory_space<vmem>>, %arg7: memref<256x128xbf16, #tpu.memory_space<vmem>>, %arg8: memref<1x128xf32, #tpu.memory_space<vmem>>, %arg9: memref<128x128xf32, #tpu.memory_space<vmem>>, %arg10: memref<128x128xbf16, #tpu.memory_space<vmem>>, %arg11: memref<128x128xf32, #tpu.memory_space<vmem>>) attributes {dimension_semantics = [#tpu.dimension_semantics<parallel>, #tpu.dimension_semantics<arbitrary>], iteration_bounds = array<i64: 1, 1>, scalar_prefetch = 0 : i64, scratch_operands = 2 : i64, tpu.core_type = #tpu.core_type<tc>, window_params = [{transform_indices = @transform_0, window_bounds = array<i64: 128, 128>}, {pipeline_mode = #tpu.pipeline_mode<synchronous>, transform_indices = @transform_1, window_bounds = array<i64: 1, 128>}, {pipeline_mode = #tpu.pipeline_mode<synchronous>, transform_indices = @transform_2, window_bounds = array<i64: 1, 128>}, {transform_indices = @transform_3, window_bounds = array<i64: 128, 256>}, {transform_indices = @transform_4, window_bounds = array<i64: 1, 256>}, {transform_indices = @transform_5, window_bounds = array<i64: 256, 128>}, {pipeline_mode = #tpu.pipeline_mode<synchronous>, transform_indices = @transform_6, window_bounds = array<i64: 1, 128>}, {transform_indices = @transform_7, window_bounds = array<i64: 128, 128>}]} {
    %c0_i32 = arith.constant 0 : i32
    %0 = arith.cmpi eq, %arg1, %c0_i32 : i32
    %1 = arith.extui %0 : i1 to i32
    %c0_i32_0 = arith.constant 0 : i32
    %2 = arith.cmpi ne, %1, %c0_i32_0 : i32
    scf.if %2 {
      %c0_18 = arith.constant 0 : index
      %c0_19 = arith.constant 0 : index
      %26 = vector.load %arg2[%c0_18, %c0_19] : memref<128x128xf32, #tpu.memory_space<vmem>>, vector<128x128xf32>
      %cst_20 = arith.constant dense<0.000000e+00> : vector<128xf32>
      %27 = vector.multi_reduction <add>, %26, %cst_20 [1] : vector<128x128xf32> to vector<128xf32>
      %28 = vector.shape_cast %27 : vector<128xf32> to vector<128x1xf32>
      %cst_21 = arith.constant 1.280000e+02 : f32
      %29 = vector.broadcast %cst_21 : f32 to vector<128x1xf32>
      %30 = arith.divf %28, %29 : vector<128x1xf32>
      %31 = vector.broadcast %30 : vector<128x1xf32> to vector<128x128xf32>
      %32 = arith.subf %26, %31 : vector<128x128xf32>
      %33 = arith.mulf %32, %32 : vector<128x128xf32>
      %cst_22 = arith.constant dense<0.000000e+00> : vector<128xf32>
      %34 = vector.multi_reduction <add>, %33, %cst_22 [1] : vector<128x128xf32> to vector<128xf32>
      %35 = vector.shape_cast %34 : vector<128xf32> to vector<128x1xf32>
      %cst_23 = arith.constant 1.280000e+02 : f32
      %36 = vector.broadcast %cst_23 : f32 to vector<128x1xf32>
      %37 = arith.divf %35, %36 : vector<128x1xf32>
      %38 = vector.broadcast %30 : vector<128x1xf32> to vector<128x128xf32>
      %39 = arith.subf %26, %38 : vector<128x128xf32>
      %cst_24 = arith.constant 9.99999974E-6 : f32
      %40 = vector.broadcast %cst_24 : f32 to vector<128x1xf32>
      %41 = arith.addf %37, %40 : vector<128x1xf32>
      %42 = math.rsqrt %41 : vector<128x1xf32>
      %43 = vector.broadcast %42 : vector<128x1xf32> to vector<128x128xf32>
      %44 = arith.mulf %39, %43 : vector<128x128xf32>
      %c0_25 = arith.constant 0 : index
      %c0_26 = arith.constant 0 : index
      %45 = vector.load %arg3[%c0_25, %c0_26] : memref<1x128xf32, #tpu.memory_space<vmem>>, vector<1x128xf32>
      %46 = vector.broadcast %45 : vector<1x128xf32> to vector<128x128xf32>
      %47 = arith.mulf %44, %46 : vector<128x128xf32>
      %c0_27 = arith.constant 0 : index
      %c0_28 = arith.constant 0 : index
      %48 = vector.load %arg4[%c0_27, %c0_28] : memref<1x128xf32, #tpu.memory_space<vmem>>, vector<1x128xf32>
      %49 = vector.broadcast %48 : vector<1x128xf32> to vector<128x128xf32>
      %50 = arith.addf %47, %49 : vector<128x128xf32>
      %51 = arith.truncf %50 : vector<128x128xf32> to vector<128x128xbf16>
      %c0_29 = arith.constant 0 : index
      %c0_30 = arith.constant 0 : index
      %52 = vector.load %arg10[%c0_29, %c0_30] : memref<128x128xbf16, #tpu.memory_space<vmem>>, vector<128x128xbf16>
      tpu.vector_store %arg10[%c0_29, %c0_30], %51 {strides = array<i32>} : memref<128x128xbf16, #tpu.memory_space<vmem>>, vector<128x128xbf16>,
      %cst_31 = arith.constant 0.000000e+00 : f32
      %53 = vector.broadcast %cst_31 : f32 to vector<128x128xf32>
      %c0_32 = arith.constant 0 : index
      %c0_33 = arith.constant 0 : index
      %54 = vector.load %arg11[%c0_32, %c0_33] : memref<128x128xf32, #tpu.memory_space<vmem>>, vector<128x128xf32>
      tpu.vector_store %arg11[%c0_32, %c0_33], %53 {strides = array<i32>} : memref<128x128xf32, #tpu.memory_space<vmem>>, vector<128x128xf32>,
    } else {
    }
    %c0 = arith.constant 0 : index
    %c0_1 = arith.constant 0 : index
    %3 = vector.load %arg10[%c0, %c0_1] : memref<128x128xbf16, #tpu.memory_space<vmem>>, vector<128x128xbf16>
    %c0_2 = arith.constant 0 : index
    %c0_3 = arith.constant 0 : index
    %4 = vector.load %arg5[%c0_2, %c0_3] : memref<128x256xbf16, #tpu.memory_space<vmem>>, vector<128x256xbf16>
    %cst = arith.constant dense<0.000000e+00> : vector<128x256xf32>
    %5 = tpu.matmul %3, %4, %cst {dimension_numbers = #tpu.dot_dimension_numbers<[1], [0], [0], [1], [0, 0, 1, 1], [], []>} : vector<128x128xbf16>, vector<128x256xbf16>, vector<128x256xf32> -> vector<128x256xf32>
    %c0_4 = arith.constant 0 : index
    %c0_5 = arith.constant 0 : index
    %6 = vector.load %arg6[%c0_4, %c0_5] : memref<1x256xf32, #tpu.memory_space<vmem>>, vector<1x256xf32>
    %7 = vector.broadcast %6 : vector<1x256xf32> to vector<128x256xf32>
    %8 = arith.addf %5, %7 : vector<128x256xf32>
    %cst_6 = arith.constant 5.000000e-01 : f32
    %9 = vector.broadcast %cst_6 : f32 to vector<128x256xf32>
    %10 = arith.mulf %9, %8 : vector<128x256xf32>
    %cst_7 = arith.constant 0.707106769 : f32
    %11 = vector.broadcast %cst_7 : f32 to vector<128x256xf32>
    %12 = arith.mulf %8, %11 : vector<128x256xf32>
    %13 = math.erf %12 : vector<128x256xf32>
    %cst_8 = arith.constant 1.000000e+00 : f32
    %14 = vector.broadcast %cst_8 : f32 to vector<128x256xf32>
    %15 = arith.addf %14, %13 : vector<128x256xf32>
    %16 = arith.mulf %10, %15 : vector<128x256xf32>
    %c0_9 = arith.constant 0 : index
    %c0_10 = arith.constant 0 : index
    %17 = vector.load %arg11[%c0_9, %c0_10] : memref<128x128xf32, #tpu.memory_space<vmem>>, vector<128x128xf32>
    %18 = arith.truncf %16 : vector<128x256xf32> to vector<128x256xbf16>
    %c0_11 = arith.constant 0 : index
    %c0_12 = arith.constant 0 : index
    %19 = vector.load %arg7[%c0_11, %c0_12] : memref<256x128xbf16, #tpu.memory_space<vmem>>, vector<256x128xbf16>
    %cst_13 = arith.constant dense<0.000000e+00> : vector<128x128xf32>
    %20 = tpu.matmul %18, %19, %cst_13 {dimension_numbers = #tpu.dot_dimension_numbers<[1], [0], [0], [1], [0, 0, 1, 1], [], []>} : vector<128x256xbf16>, vector<256x128xbf16>, vector<128x128xf32> -> vector<128x128xf32>
    %21 = arith.addf %17, %20 : vector<128x128xf32>
    %c0_14 = arith.constant 0 : index
    %c0_15 = arith.constant 0 : index
    %22 = vector.load %arg11[%c0_14, %c0_15] : memref<128x128xf32, #tpu.memory_space<vmem>>, vector<128x128xf32>
    tpu.vector_store %arg11[%c0_14, %c0_15], %21 {strides = array<i32>} : memref<128x128xf32, #tpu.memory_space<vmem>>, vector<128x128xf32>,
    %c0_i32_16 = arith.constant 0 : i32
    %23 = arith.cmpi eq, %arg1, %c0_i32_16 : i32
    %24 = arith.extui %23 : i1 to i32
    %c0_i32_17 = arith.constant 0 : i32
    %25 = arith.cmpi ne, %24, %c0_i32_17 : i32
    scf.if %25 {
      %c0_18 = arith.constant 0 : index
      %c0_19 = arith.constant 0 : index
      %26 = vector.load %arg11[%c0_18, %c0_19] : memref<128x128xf32, #tpu.memory_space<vmem>>, vector<128x128xf32>
      %c0_20 = arith.constant 0 : index
      %c0_21 = arith.constant 0 : index
      %27 = vector.load %arg8[%c0_20, %c0_21] : memref<1x128xf32, #tpu.memory_space<vmem>>, vector<1x128xf32>
      %28 = vector.broadcast %27 : vector<1x128xf32> to vector<128x128xf32>
      %29 = arith.addf %26, %28 : vector<128x128xf32>
      %c0_22 = arith.constant 0 : index
      %c0_23 = arith.constant 0 : index
      %30 = vector.load %arg9[%c0_22, %c0_23] : memref<128x128xf32, #tpu.memory_space<vmem>>, vector<128x128xf32>
      tpu.vector_store %arg9[%c0_22, %c0_23], %29 {strides = array<i32>} : memref<128x128xf32, #tpu.memory_space<vmem>>, vector<128x128xf32>,
    } else {
    }
    return
  }
  func.func @transform_0(%arg0: i32, %arg1: i32) -> (i32, i32) {
    %c0_i32 = arith.constant 0 : i32
    %c0_i32_0 = arith.constant 0 : i32
    return %arg0, %c0_i32 : i32, i32
  }
  func.func @transform_1(%arg0: i32, %arg1: i32) -> (i32, i32) {
    %c0_i32 = arith.constant 0 : i32
    %c0_i32_0 = arith.constant 0 : i32
    %c0_i32_1 = arith.constant 0 : i32
    return %c0_i32, %c0_i32_0 : i32, i32
  }
  func.func @transform_2(%arg0: i32, %arg1: i32) -> (i32, i32) {
    %c0_i32 = arith.constant 0 : i32
    %c0_i32_0 = arith.constant 0 : i32
    %c0_i32_1 = arith.constant 0 : i32
    return %c0_i32, %c0_i32_0 : i32, i32
  }
  func.func @transform_3(%arg0: i32, %arg1: i32) -> (i32, i32) {
    %c0_i32 = arith.constant 0 : i32
    %c0_i32_0 = arith.constant 0 : i32
    return %c0_i32, %arg1 : i32, i32
  }
  func.func @transform_4(%arg0: i32, %arg1: i32) -> (i32, i32) {
    %c0_i32 = arith.constant 0 : i32
    %c0_i32_0 = arith.constant 0 : i32
    return %c0_i32, %arg1 : i32, i32
  }
  func.func @transform_5(%arg0: i32, %arg1: i32) -> (i32, i32) {
    %c0_i32 = arith.constant 0 : i32
    %c0_i32_0 = arith.constant 0 : i32
    return %arg1, %c0_i32 : i32, i32
  }
  func.func @transform_6(%arg0: i32, %arg1: i32) -> (i32, i32) {
    %c0_i32 = arith.constant 0 : i32
    %c0_i32_0 = arith.constant 0 : i32
    %c0_i32_1 = arith.constant 0 : i32
    return %c0_i32, %c0_i32_0 : i32, i32
  }
  func.func @transform_7(%arg0: i32, %arg1: i32) -> (i32, i32) {
    %c0_i32 = arith.constant 0 : i32
    %c0_i32_0 = arith.constant 0 : i32
    return %arg0, %c0_i32 : i32, i32
  }
}

</mosaic_0001>

<llo_original>
// kernel: tpu_custom_call.1
$region0: #{tpu_custom_call.1}
  #allocation0 [shape = 'u32[]', space=smem, size = 0x4, offset = 0x4, fixed_abs, tag = 'smem constant byte address 0x4 - core index']
  #allocation1 [shape = 'u32[72,128]{1,0:T(1,128)}', space=vmem, size = 0x9000, scoped, tag = 'internal scratch']
  #allocation2 [shape = 'bf16[128,128]{1,0:T(8,128)(2,1)}', space=vmem, size = 0x8000, scoped, tag = 'scratch operand']
  #allocation3 [shape = 'f32[128,128]{1,0:T(8,128)}', space=vmem, size = 0x10000, scoped, tag = 'scratch operand']
  %s0 = inlined_call_operand.hbm [shape: f32[128,128], index: 0, kind: input, shape index: {}]
  %s1 = inlined_call_operand.hbm [shape: f32[1,128], index: 1, kind: input, shape index: {}]
  %s2 = inlined_call_operand.vmem [shape: f32[1,128], index: 2, kind: input, shape index: {}]
  %s3 = inlined_call_operand.hbm [shape: bf16[128,256], index: 3, kind: input, shape index: {}]
  %s4 = inlined_call_operand.vmem [shape: f32[1,256], index: 4, kind: input, shape index: {}]
  %s5 = inlined_call_operand.hbm [shape: bf16[256,128], index: 5, kind: input, shape index: {}]
  %s6 = inlined_call_operand.vmem [shape: f32[1,128], index: 6, kind: input, shape index: {}]
  %s7 = inlined_call_operand.hbm [shape: f32[128,128], index: 7, kind: output, shape index: {}]
  %s8 = sld [smem:[#allocation0]]
  $region62: #{tpu_custom_call.1} parent=0
    _
  %s10 = ssub.s32 1, %s8
  %s11 = scalar_select 0, %s10, %s8
  $region1: #{tpu_custom_call.1} parent=0
    #allocation4 [shape = 'u8[65536]{0}', space=vmem, size = 0x10000, scoped, tag = 'input window, operand 0, single buffered']
    #allocation5 [shape = 's32[1]{0}', space=sflag, size = 0x4, scoped, tag = 'scoped memory for tpu_custom_call.1']
    #allocation6 [shape = 's32[1]{0}', space=sflag, size = 0x4, scoped, tag = 'scoped memory for tpu_custom_call.1']
    #allocation7 [shape = 'u8[512]{0}', space=vmem, size = 0x400, scoped, tag = 'input window, operand 1, single buffered']
    #allocation8 [shape = 's32[1]{0}', space=sflag, size = 0x4, scoped, tag = 'scoped memory for tpu_custom_call.1']
    #allocation9 [shape = 'u8[65536]{0}', space=vmem, size = 0x10000, scoped, tag = 'input window, operand 3, single buffered']
    #allocation10 [shape = 'u8[65536]{0}', space=vmem, size = 0x10000, scoped, tag = 'input window, operand 5, single buffered']
    #allocation11 [shape = 's32[1]{0}', space=sflag, size = 0x4, scoped, tag = 'scoped memory for tpu_custom_call.1']
    #allocation12 [shape = 'u8[65536]{0}', space=vmem, size = 0x10000, scoped, tag = 'output window, operand 0, single buffered']
    %12 = vsyncpa [#allocation5], 0
    %13 = vsyncpa [#allocation8], 0
    %14 = vsyncpa [#allocation11], 0
    %15 = vsyncpa [#allocation6], 0
    // Predicated region
    $region2: #{tpu_custom_call.1} parent=1 // pred_check
      _
    $region3: #{tpu_custom_call.1} parent=1 // pred_check_branch
      %17 = sbr.rel (0) target = $region5
    $region4: #{tpu_custom_call.1} parent=1 // pred_region
      %19 = vsyncadd [#allocation5], 0
      %s20 = sshll.u32 %s0, 4
      %s21 = int_to_ptr.hbm [resolvable:$true] %s20
      %s22 = sshll.u32 [#allocation4], 4
      %s23 = int_to_ptr.vmem [resolvable:$true] %s22
      %28 = dma.hbm_to_vmem [thread:$0]  %s21, 2048, %s23, [#allocation5], 128, 128, 8
    $region5: #{tpu_custom_call.1} parent=1 // pred_fallthru
      _
    // Predicated region
    $region6: #{tpu_custom_call.1} parent=1 // pred_check
      _
    $region7: #{tpu_custom_call.1} parent=1 // pred_check_branch
      %30 = sbr.rel (0) target = $region9
    $region8: #{tpu_custom_call.1} parent=1 // pred_region
      %32 = vsyncadd [#allocation8], 0
      %s34 = sshll.u32 %s1, 4
      %s35 = int_to_ptr.hbm [resolvable:$true] %s34
      %s36 = sshll.u32 [#allocation7], 4
      %s37 = int_to_ptr.vmem [resolvable:$true] %s36
      %39 = dma.hbm_to_vmem [thread:$0]  %s35, 16, %s37, [#allocation8]
    $region9: #{tpu_custom_call.1} parent=1 // pred_fallthru
      _
    // Predicated region
    $region10: #{tpu_custom_call.1} parent=1 // pred_check
      _
    $region11: #{tpu_custom_call.1} parent=1 // pred_check_branch
      %41 = sbr.rel (0) target = $region13
    $region12: #{tpu_custom_call.1} parent=1 // pred_region
      _
    $region13: #{tpu_custom_call.1} parent=1 // pred_fallthru
      _
    // Predicated region
    $region14: #{tpu_custom_call.1} parent=1 // pred_check
      _
    $region15: #{tpu_custom_call.1} parent=1 // pred_check_branch
      %43 = sbr.rel (0) target = $region17
    $region16: #{tpu_custom_call.1} parent=1 // pred_region
      %45 = vsyncadd [#allocation8], 0
      %s46 = sshll.u32 %s3, 4
      %s47 = int_to_ptr.hbm [resolvable:$true] %s46
      %s48 = sshll.u32 [#allocation9], 4
      %s49 = int_to_ptr.vmem [resolvable:$true] %s48
      %54 = dma.hbm_to_vmem [thread:$0]  %s47, 2048, %s49, [#allocation8], 128, 128, 8
    $region17: #{tpu_custom_call.1} parent=1 // pred_fallthru
      _
    // Predicated region
    $region18: #{tpu_custom_call.1} parent=1 // pred_check
      _
    $region19: #{tpu_custom_call.1} parent=1 // pred_check_branch
      %56 = sbr.rel (0) target = $region21
    $region20: #{tpu_custom_call.1} parent=1 // pred_region
      _
    $region21: #{tpu_custom_call.1} parent=1 // pred_fallthru
      _
    // Predicated region
    $region22: #{tpu_custom_call.1} parent=1 // pred_check
      _
    $region23: #{tpu_custom_call.1} parent=1 // pred_check_branch
      %58 = sbr.rel (0) target = $region25
    $region24: #{tpu_custom_call.1} parent=1 // pred_region
      %60 = vsyncadd [#allocation11], 0
      %s61 = sshll.u32 %s5, 4
      %s62 = int_to_ptr.hbm [resolvable:$true] %s61
      %s63 = sshll.u32 [#allocation10], 4
      %s64 = int_to_ptr.vmem [resolvable:$true] %s63
      %69 = dma.hbm_to_vmem [thread:$0]  %s62, 2048, %s64, [#allocation11], 64, 64, 4
    $region25: #{tpu_custom_call.1} parent=1 // pred_fallthru
      _
    // Predicated region
    $region26: #{tpu_custom_call.1} parent=1 // pred_check
      _
    $region27: #{tpu_custom_call.1} parent=1 // pred_check_branch
      %71 = sbr.rel (0) target = $region29
    $region28: #{tpu_custom_call.1} parent=1 // pred_region
      _
    $region29: #{tpu_custom_call.1} parent=1 // pred_fallthru
      _
    // Predicated region
    $region30: #{tpu_custom_call.1} parent=1 // pred_check
      _
    $region31: #{tpu_custom_call.1} parent=1 // pred_check_branch
      %73 = sbr.rel (0) target = $region33
    $region32: #{tpu_custom_call.1} parent=1 // pred_region
      %75 = dma.done [#allocation5], 2048
    $region33: #{tpu_custom_call.1} parent=1 // pred_fallthru
      _
    // Predicated region
    $region34: #{tpu_custom_call.1} parent=1 // pred_check
      _
    $region35: #{tpu_custom_call.1} parent=1 // pred_check_branch
      %77 = sbr.rel (0) target = $region37
    $region36: #{tpu_custom_call.1} parent=1 // pred_region
      %79 = dma.done [#allocation8], 16
    $region37: #{tpu_custom_call.1} parent=1 // pred_fallthru
      _
    // Predicated region
    $region38: #{tpu_custom_call.1} parent=1 // pred_check
      _
    $region39: #{tpu_custom_call.1} parent=1 // pred_check_branch
      %81 = sbr.rel (0) target = $region41
    $region40: #{tpu_custom_call.1} parent=1 // pred_region
      %83 = dma.done [#allocation8], 2048
    $region41: #{tpu_custom_call.1} parent=1 // pred_fallthru
      _
    // Predicated region
    $region42: #{tpu_custom_call.1} parent=1 // pred_check
      _
    $region43: #{tpu_custom_call.1} parent=1 // pred_check_branch
      %85 = sbr.rel (0) target = $region45
    $region44: #{tpu_custom_call.1} parent=1 // pred_region
      %87 = dma.done [#allocation11], 2048
    $region45: #{tpu_custom_call.1} parent=1 // pred_fallthru
      _
    %p88 = scmp.eq.s32.totalorder 0, 0
    // Predicated region
    $region46: #{tpu_custom_call.1} parent=1 // pred_check
      %p89 = pneg %p88
    $region47: #{tpu_custom_call.1} parent=1 // pred_check_branch
      %91 = sbr.rel (%p89) target = $region49
    $region48: #{tpu_custom_call.1} parent=1 // pred_region
      %v92 = vld [vmem:[#allocation4] sm:$0xff]
      %v93 = vld [vmem:[#allocation4 + $0x8] sm:$0xff]
      %v94 = vld [vmem:[#allocation4 + $0x10] sm:$0xff]
      %v95 = vld [vmem:[#allocation4 + $0x18] sm:$0xff]
      %v96 = vld [vmem:[#allocation4 + $0x20] sm:$0xff]
      %v97 = vld [vmem:[#allocation4 + $0x28] sm:$0xff]
      %v98 = vld [vmem:[#allocation4 + $0x30] sm:$0xff]
      %v99 = vld [vmem:[#allocation4 + $0x38] sm:$0xff]
      %v100 = vld [vmem:[#allocation4 + $0x40] sm:$0xff]
      %v101 = vld [vmem:[#allocation4 + $0x48] sm:$0xff]
      %v102 = vld [vmem:[#allocation4 + $0x50] sm:$0xff]
      %v103 = vld [vmem:[#allocation4 + $0x58] sm:$0xff]
      %v104 = vld [vmem:[#allocation4 + $0x60] sm:$0xff]
      %v105 = vld [vmem:[#allocation4 + $0x68] sm:$0xff]
      %v106 = vld [vmem:[#allocation4 + $0x70] sm:$0xff]
      %v107 = vld [vmem:[#allocation4 + $0x78] sm:$0xff]
      %108 = vadd.xlane.f32.xlu0 %v92
      %v109 = vpop.xlane.xlu0 %108
      %110 = vadd.xlane.f32.xlu0 %v93
      %v111 = vpop.xlane.xlu0 %110
      %112 = vadd.xlane.f32.xlu0 %v94
      %v113 = vpop.xlane.xlu0 %112
      %114 = vadd.xlane.f32.xlu0 %v95
      %v115 = vpop.xlane.xlu0 %114
      %116 = vadd.xlane.f32.xlu0 %v96
      %v117 = vpop.xlane.xlu0 %116
      %118 = vadd.xlane.f32.xlu0 %v97
      %v119 = vpop.xlane.xlu0 %118
      %120 = vadd.xlane.f32.xlu0 %v98
      %v121 = vpop.xlane.xlu0 %120
      %122 = vadd.xlane.f32.xlu0 %v99
      %v123 = vpop.xlane.xlu0 %122
      %124 = vadd.xlane.f32.xlu0 %v100
      %v125 = vpop.xlane.xlu0 %124
      %126 = vadd.xlane.f32.xlu0 %v101
      %v127 = vpop.xlane.xlu0 %126
      %128 = vadd.xlane.f32.xlu0 %v102
      %v129 = vpop.xlane.xlu0 %128
      %130 = vadd.xlane.f32.xlu0 %v103
      %v131 = vpop.xlane.xlu0 %130
      %132 = vadd.xlane.f32.xlu0 %v104
      %v133 = vpop.xlane.xlu0 %132
      %134 = vadd.xlane.f32.xlu0 %v105
      %v135 = vpop.xlane.xlu0 %134
      %136 = vadd.xlane.f32.xlu0 %v106
      %v137 = vpop.xlane.xlu0 %136
      %138 = vadd.xlane.f32.xlu0 %v107
      %v139 = vpop.xlane.xlu0 %138
      %v140 = vrcp.pop 128.0
      %v141 = vmul.f32 128.0, %v140
      %v142 = vsub.f32 1.0, %v141
      %v143 = vmul.f32 %v140, %v142
      %v144 = vadd.f32 %v140, %v143
      %vm145 = vweird.f32 %v140
      %v146 = vsel %vm145, %v140, %v144
      %v147 = vmul.f32 %v109, %v146
      %v148 = vmul.f32 %v111, %v146
      %v149 = vmul.f32 %v113, %v146
      %v150 = vmul.f32 %v115, %v146
      %v151 = vmul.f32 %v117, %v146
      %v152 = vmul.f32 %v119, %v146
      %v153 = vmul.f32 %v121, %v146
      %v154 = vmul.f32 %v123, %v146
      %v155 = vmul.f32 %v125, %v146
      %v156 = vmul.f32 %v127, %v146
      %v157 = vmul.f32 %v129, %v146
      %v158 = vmul.f32 %v131, %v146
      %v159 = vmul.f32 %v133, %v146
      %v160 = vmul.f32 %v135, %v146
      %v161 = vmul.f32 %v137, %v146
      %v162 = vmul.f32 %v139, %v146
      %v163 = vsub.f32 %v92, %v147
      %v164 = vsub.f32 %v93, %v148
      %v165 = vsub.f32 %v94, %v149
      %v166 = vsub.f32 %v95, %v150
      %v167 = vsub.f32 %v96, %v151
      %v168 = vsub.f32 %v97, %v152
      %v169 = vsub.f32 %v98, %v153
      %v170 = vsub.f32 %v99, %v154
      %v171 = vsub.f32 %v100, %v155
      %v172 = vsub.f32 %v101, %v156
      %v173 = vsub.f32 %v102, %v157
      %v174 = vsub.f32 %v103, %v158
      %v175 = vsub.f32 %v104, %v159
      %v176 = vsub.f32 %v105, %v160
      %v177 = vsub.f32 %v106, %v161
      %v178 = vsub.f32 %v107, %v162
      %v179 = vmul.f32 %v163, %v163
      %v180 = vmul.f32 %v164, %v164
      %v181 = vmul.f32 %v165, %v165
      %v182 = vmul.f32 %v166, %v166
      %v183 = vmul.f32 %v167, %v167
      %v184 = vmul.f32 %v168, %v168
      %v185 = vmul.f32 %v169, %v169
      %v186 = vmul.f32 %v170, %v170
      %v187 = vmul.f32 %v171, %v171
      %v188 = vmul.f32 %v172, %v172
      %v189 = vmul.f32 %v173, %v173
      %v190 = vmul.f32 %v174, %v174
      %v191 = vmul.f32 %v175, %v175
      %v192 = vmul.f32 %v176, %v176
      %v193 = vmul.f32 %v177, %v177
      %v194 = vmul.f32 %v178, %v178
      %195 = vadd.xlane.f32.xlu0 %v179
      %v196 = vpop.xlane.xlu0 %195
      %197 = vadd.xlane.f32.xlu0 %v180
      %v198 = vpop.xlane.xlu0 %197
      %199 = vadd.xlane.f32.xlu0 %v181
      %v200 = vpop.xlane.xlu0 %199
      %201 = vadd.xlane.f32.xlu0 %v182
      %v202 = vpop.xlane.xlu0 %201
      %203 = vadd.xlane.f32.xlu0 %v183
      %v204 = vpop.xlane.xlu0 %203
      %205 = vadd.xlane.f32.xlu0 %v184
      %v206 = vpop.xlane.xlu0 %205
      %207 = vadd.xlane.f32.xlu0 %v185
      %v208 = vpop.xlane.xlu0 %207
      %209 = vadd.xlane.f32.xlu0 %v186
      %v210 = vpop.xlane.xlu0 %209
      %211 = vadd.xlane.f32.xlu0 %v187
      %v212 = vpop.xlane.xlu0 %211
      %213 = vadd.xlane.f32.xlu0 %v188
      %v214 = vpop.xlane.xlu0 %213
      %215 = vadd.xlane.f32.xlu0 %v189
      %v216 = vpop.xlane.xlu0 %215
      %217 = vadd.xlane.f32.xlu0 %v190
      %v218 = vpop.xlane.xlu0 %217
      %219 = vadd.xlane.f32.xlu0 %v191
      %v220 = vpop.xlane.xlu0 %219
      %221 = vadd.xlane.f32.xlu0 %v192
      %v222 = vpop.xlane.xlu0 %221
      %223 = vadd.xlane.f32.xlu0 %v193
      %v224 = vpop.xlane.xlu0 %223
      %225 = vadd.xlane.f32.xlu0 %v194
      %v226 = vpop.xlane.xlu0 %225
      %v227 = vmul.f32 %v196, %v146
      %v228 = vmul.f32 %v198, %v146
      %v229 = vmul.f32 %v200, %v146
      %v230 = vmul.f32 %v202, %v146
      %v231 = vmul.f32 %v204, %v146
      %v232 = vmul.f32 %v206, %v146
      %v233 = vmul.f32 %v208, %v146
      %v234 = vmul.f32 %v210, %v146
      %v235 = vmul.f32 %v212, %v146
      %v236 = vmul.f32 %v214, %v146
      %v237 = vmul.f32 %v216, %v146
      %v238 = vmul.f32 %v218, %v146
      %v239 = vmul.f32 %v220, %v146
      %v240 = vmul.f32 %v222, %v146
      %v241 = vmul.f32 %v224, %v146
      %v242 = vmul.f32 %v226, %v146
      %v243 = vadd.f32 %v227, 1e-05
      %v244 = vadd.f32 %v228, 1e-05
      %v245 = vadd.f32 %v229, 1e-05
      %v246 = vadd.f32 %v230, 1e-05
      %v247 = vadd.f32 %v231, 1e-05
      %v248 = vadd.f32 %v232, 1e-05
      %v249 = vadd.f32 %v233, 1e-05
      %v250 = vadd.f32 %v234, 1e-05
      %v251 = vadd.f32 %v235, 1e-05
      %v252 = vadd.f32 %v236, 1e-05
      %v253 = vadd.f32 %v237, 1e-05
      %v254 = vadd.f32 %v238, 1e-05
      %v255 = vadd.f32 %v239, 1e-05
      %v256 = vadd.f32 %v240, 1e-05
      %v257 = vadd.f32 %v241, 1e-05
      %v258 = vadd.f32 %v242, 1e-05
      %v259 = vrsqrt.pop %v243
      %v260 = vmul.f32 %v259, %v243
      %v261 = vmul.f32 %v260, %v259
      %v262 = vmul.f32 0.5, %v261
      %v263 = vsub.f32 1.5, %v262
      %v264 = vmul.f32 %v259, %v263
      %vm265 = vweird.f32 %v243
      %vm266 = vweird.f32 %v259
      %vm267 = vmor %vm265, %vm266
      %v268 = vsel %vm267, %v259, %v264
      %v269 = vrsqrt.pop %v244
      %v270 = vmul.f32 %v269, %v244
      %v271 = vmul.f32 %v270, %v269
      %v272 = vmul.f32 0.5, %v271
      %v273 = vsub.f32 1.5, %v272
      %v274 = vmul.f32 %v269, %v273
      %vm275 = vweird.f32 %v244
      %vm276 = vweird.f32 %v269
      %vm277 = vmor %vm275, %vm276
      %v278 = vsel %vm277, %v269, %v274
      %v279 = vrsqrt.pop %v245
      %v280 = vmul.f32 %v279, %v245
      %v281 = vmul.f32 %v280, %v279
      %v282 = vmul.f32 0.5, %v281
      %v283 = vsub.f32 1.5, %v282
      %v284 = vmul.f32 %v279, %v283
      %vm285 = vweird.f32 %v245
      %vm286 = vweird.f32 %v279
      %vm287 = vmor %vm285, %vm286
      %v288 = vsel %vm287, %v279, %v284
      %v289 = vrsqrt.pop %v246
      %v290 = vmul.f32 %v289, %v246
      %v291 = vmul.f32 %v290, %v289
      %v292 = vmul.f32 0.5, %v291
      %v293 = vsub.f32 1.5, %v292
      %v294 = vmul.f32 %v289, %v293
      %vm295 = vweird.f32 %v246
      %vm296 = vweird.f32 %v289
      %vm297 = vmor %vm295, %vm296
      %v298 = vsel %vm297, %v289, %v294
      %v299 = vrsqrt.pop %v247
      %v300 = vmul.f32 %v299, %v247
      %v301 = vmul.f32 %v300, %v299
      %v302 = vmul.f32 0.5, %v301
      %v303 = vsub.f32 1.5, %v302
      %v304 = vmul.f32 %v299, %v303
      %vm305 = vweird.f32 %v247
      %vm306 = vweird.f32 %v299
      %vm307 = vmor %vm305, %vm306
      %v308 = vsel %vm307, %v299, %v304
      %v309 = vrsqrt.pop %v248
      %v310 = vmul.f32 %v309, %v248
      %v311 = vmul.f32 %v310, %v309
      %v312 = vmul.f32 0.5, %v311
      %v313 = vsub.f32 1.5, %v312
      %v314 = vmul.f32 %v309, %v313
      %vm315 = vweird.f32 %v248
      %vm316 = vweird.f32 %v309
      %vm317 = vmor %vm315, %vm316
      %v318 = vsel %vm317, %v309, %v314
      %v319 = vrsqrt.pop %v249
      %v320 = vmul.f32 %v319, %v249
      %v321 = vmul.f32 %v320, %v319
      %v322 = vmul.f32 0.5, %v321
      %v323 = vsub.f32 1.5, %v322
      %v324 = vmul.f32 %v319, %v323
      %vm325 = vweird.f32 %v249
      %vm326 = vweird.f32 %v319
      %vm327 = vmor %vm325, %vm326
      %v328 = vsel %vm327, %v319, %v324
      %v329 = vrsqrt.pop %v250
      %v330 = vmul.f32 %v329, %v250
      %v331 = vmul.f32 %v330, %v329
      %v332 = vmul.f32 0.5, %v331
      %v333 = vsub.f32 1.5, %v332
      %v334 = vmul.f32 %v329, %v333
      %vm335 = vweird.f32 %v250
      %vm336 = vweird.f32 %v329
      %vm337 = vmor %vm335, %vm336
      %v338 = vsel %vm337, %v329, %v334
      %v339 = vrsqrt.pop %v251
      %v340 = vmul.f32 %v339, %v251
      %v341 = vmul.f32 %v340, %v339
      %v342 = vmul.f32 0.5, %v341
      %v343 = vsub.f32 1.5, %v342
      %v344 = vmul.f32 %v339, %v343
      %vm345 = vweird.f32 %v251
      %vm346 = vweird.f32 %v339
      %vm347 = vmor %vm345, %vm346
      %v348 = vsel %vm347, %v339, %v344
      %v349 = vrsqrt.pop %v252
      %v350 = vmul.f32 %v349, %v252
      %v351 = vmul.f32 %v350, %v349
      %v352 = vmul.f32 0.5, %v351
      %v353 = vsub.f32 1.5, %v352
      %v354 = vmul.f32 %v349, %v353
      %vm355 = vweird.f32 %v252
      %vm356 = vweird.f32 %v349
      %vm357 = vmor %vm355, %vm356
      %v358 = vsel %vm357, %v349, %v354
      %v359 = vrsqrt.pop %v253
      %v360 = vmul.f32 %v359, %v253
      %v361 = vmul.f32 %v360, %v359
      %v362 = vmul.f32 0.5, %v361
      %v363 = vsub.f32 1.5, %v362
      %v364 = vmul.f32 %v359, %v363
      %vm365 = vweird.f32 %v253
      %vm366 = vweird.f32 %v359
      %vm367 = vmor %vm365, %vm366
      %v368 = vsel %vm367, %v359, %v364
      %v369 = vrsqrt.pop %v254
      %v370 = vmul.f32 %v369, %v254
      %v371 = vmul.f32 %v370, %v369
      %v372 = vmul.f32 0.5, %v371
      %v373 = vsub.f32 1.5, %v372
      %v374 = vmul.f32 %v369, %v373
      %vm375 = vweird.f32 %v254
      %vm376 = vweird.f32 %v369
      %vm377 = vmor %vm375, %vm376
      %v378 = vsel %vm377, %v369, %v374
      %v379 = vrsqrt.pop %v255
      %v380 = vmul.f32 %v379, %v255
      %v381 = vmul.f32 %v380, %v379
      %v382 = vmul.f32 0.5, %v381
      %v383 = vsub.f32 1.5, %v382
      %v384 = vmul.f32 %v379, %v383
      %vm385 = vweird.f32 %v255
      %vm386 = vweird.f32 %v379
      %vm387 = vmor %vm385, %vm386
      %v388 = vsel %vm387, %v379, %v384
      %v389 = vrsqrt.pop %v256
      %v390 = vmul.f32 %v389, %v256
      %v391 = vmul.f32 %v390, %v389
      %v392 = vmul.f32 0.5, %v391
      %v393 = vsub.f32 1.5, %v392
      %v394 = vmul.f32 %v389, %v393
      %vm395 = vweird.f32 %v256
      %vm396 = vweird.f32 %v389
      %vm397 = vmor %vm395, %vm396
      %v398 = vsel %vm397, %v389, %v394
      %v399 = vrsqrt.pop %v257
      %v400 = vmul.f32 %v399, %v257
      %v401 = vmul.f32 %v400, %v399
      %v402 = vmul.f32 0.5, %v401
      %v403 = vsub.f32 1.5, %v402
      %v404 = vmul.f32 %v399, %v403
      %vm405 = vweird.f32 %v257
      %vm406 = vweird.f32 %v399
      %vm407 = vmor %vm405, %vm406
      %v408 = vsel %vm407, %v399, %v404
      %v409 = vrsqrt.pop %v258
      %v410 = vmul.f32 %v409, %v258
      %v411 = vmul.f32 %v410, %v409
      %v412 = vmul.f32 0.5, %v411
      %v413 = vsub.f32 1.5, %v412
      %v414 = vmul.f32 %v409, %v413
      %vm415 = vweird.f32 %v258
      %vm416 = vweird.f32 %v409
      %vm417 = vmor %vm415, %vm416
      %v418 = vsel %vm417, %v409, %v414
      %v419 = vmul.f32 %v163, %v268
      %v420 = vmul.f32 %v164, %v278
      %v421 = vmul.f32 %v165, %v288
      %v422 = vmul.f32 %v166, %v298
      %v423 = vmul.f32 %v167, %v308
      %v424 = vmul.f32 %v168, %v318
      %v425 = vmul.f32 %v169, %v328
      %v426 = vmul.f32 %v170, %v338
      %v427 = vmul.f32 %v171, %v348
      %v428 = vmul.f32 %v172, %v358
      %v429 = vmul.f32 %v173, %v368
      %v430 = vmul.f32 %v174, %v378
      %v431 = vmul.f32 %v175, %v388
      %v432 = vmul.f32 %v176, %v398
      %v433 = vmul.f32 %v177, %v408
      %v434 = vmul.f32 %v178, %v418
      %v435 = vld [vmem:[#allocation7] sm:$0x1]
      %v437 = vperm.slane %v435, 0
      %v439 = vmul.f32 %v419, %v437
      %v440 = vmul.f32 %v420, %v437
      %v441 = vmul.f32 %v421, %v437
      %v442 = vmul.f32 %v422, %v437
      %v443 = vmul.f32 %v423, %v437
      %v444 = vmul.f32 %v424, %v437
      %v445 = vmul.f32 %v425, %v437
      %v446 = vmul.f32 %v426, %v437
      %v447 = vmul.f32 %v427, %v437
      %v448 = vmul.f32 %v428, %v437
      %v449 = vmul.f32 %v429, %v437
      %v450 = vmul.f32 %v430, %v437
      %v451 = vmul.f32 %v431, %v437
      %v452 = vmul.f32 %v432, %v437
      %v453 = vmul.f32 %v433, %v437
      %v454 = vmul.f32 %v434, %v437
      %v455 = vld [vmem:[%s2] sm:$0x1]
      %v457 = vperm.slane %v455, 0
      %v459 = vadd.f32 %v439, %v457
      %v460 = vadd.f32 %v440, %v457
      %v461 = vadd.f32 %v441, %v457
      %v462 = vadd.f32 %v442, %v457
      %v463 = vadd.f32 %v443, %v457
      %v464 = vadd.f32 %v444, %v457
      %v465 = vadd.f32 %v445, %v457
      %v466 = vadd.f32 %v446, %v457
      %v467 = vadd.f32 %v447, %v457
      %v468 = vadd.f32 %v448, %v457
      %v469 = vadd.f32 %v449, %v457
      %v470 = vadd.f32 %v450, %v457
      %v471 = vadd.f32 %v451, %v457
      %v472 = vadd.f32 %v452, %v457
      %v473 = vadd.f32 %v453, %v457
      %v474 = vadd.f32 %v454, %v457
      %v475 = vpack.c.bf16 %v459, %v459
      %v476 = vpack.c.bf16 %v460, %v460
      %v477 = vpack.c.bf16 %v461, %v461
      %v478 = vpack.c.bf16 %v462, %v462
      %v479 = vpack.c.bf16 %v463, %v463
      %v480 = vpack.c.bf16 %v464, %v464
      %v481 = vpack.c.bf16 %v465, %v465
      %v482 = vpack.c.bf16 %v466, %v466
      %v483 = vpack.c.bf16 %v467, %v467
      %v484 = vpack.c.bf16 %v468, %v468
      %v485 = vpack.c.bf16 %v469, %v469
      %v486 = vpack.c.bf16 %v470, %v470
      %v487 = vpack.c.bf16 %v471, %v471
      %v488 = vpack.c.bf16 %v472, %v472
      %v489 = vpack.c.bf16 %v473, %v473
      %v490 = vpack.c.bf16 %v474, %v474
      %491 = vst [vmem:[#allocation2] sm:$0xf] %v475
      %492 = vst [vmem:[#allocation2 + $0x4] sm:$0xf] %v476
      %493 = vst [vmem:[#allocation2 + $0x8] sm:$0xf] %v477
      %494 = vst [vmem:[#allocation2 + $0xc] sm:$0xf] %v478
      %495 = vst [vmem:[#allocation2 + $0x10] sm:$0xf] %v479
      %496 = vst [vmem:[#allocation2 + $0x14] sm:$0xf] %v480
      %497 = vst [vmem:[#allocation2 + $0x18] sm:$0xf] %v481
      %498 = vst [vmem:[#allocation2 + $0x1c] sm:$0xf] %v482
      %499 = vst [vmem:[#allocation2 + $0x20] sm:$0xf] %v483
      %500 = vst [vmem:[#allocation2 + $0x24] sm:$0xf] %v484
      %501 = vst [vmem:[#allocation2 + $0x28] sm:$0xf] %v485
      %502 = vst [vmem:[#allocation2 + $0x2c] sm:$0xf] %v486
      %503 = vst [vmem:[#allocation2 + $0x30] sm:$0xf] %v487
      %504 = vst [vmem:[#allocation2 + $0x34] sm:$0xf] %v488
      %505 = vst [vmem:[#allocation2 + $0x38] sm:$0xf] %v489
      %506 = vst [vmem:[#allocation2 + $0x3c] sm:$0xf] %v490
      %507 = vst [vmem:[#allocation3] sm:$0xff] 0.0
      %508 = vst [vmem:[#allocation3 + $0x8] sm:$0xff] 0.0
      %509 = vst [vmem:[#allocation3 + $0x10] sm:$0xff] 0.0
      %510 = vst [vmem:[#allocation3 + $0x18] sm:$0xff] 0.0
      %511 = vst [vmem:[#allocation3 + $0x20] sm:$0xff] 0.0
      %512 = vst [vmem:[#allocation3 + $0x28] sm:$0xff] 0.0
      %513 = vst [vmem:[#allocation3 + $0x30] sm:$0xff] 0.0
      %514 = vst [vmem:[#allocation3 + $0x38] sm:$0xff] 0.0
      %515 = vst [vmem:[#allocation3 + $0x40] sm:$0xff] 0.0
      %516 = vst [vmem:[#allocation3 + $0x48] sm:$0xff] 0.0
      %517 = vst [vmem:[#allocation3 + $0x50] sm:$0xff] 0.0
      %518 = vst [vmem:[#allocation3 + $0x58] sm:$0xff] 0.0
      %519 = vst [vmem:[#allocation3 + $0x60] sm:$0xff] 0.0
      %520 = vst [vmem:[#allocation3 + $0x68] sm:$0xff] 0.0
      %521 = vst [vmem:[#allocation3 + $0x70] sm:$0xff] 0.0
      %522 = vst [vmem:[#allocation3 + $0x78] sm:$0xff] 0.0
    $region49: #{tpu_custom_call.1} parent=1 // pred_fallthru
      _
    %v523 = vld [vmem:[#allocation2] sm:$0xf]
    %v524 = vld [vmem:[#allocation2 + $0x4] sm:$0xf]
    %v525 = vld [vmem:[#allocation2 + $0x8] sm:$0xf]
    %v526 = vld [vmem:[#allocation2 + $0xc] sm:$0xf]
    %v527 = vld [vmem:[#allocation2 + $0x10] sm:$0xf]
    %v528 = vld [vmem:[#allocation2 + $0x14] sm:$0xf]
    %v529 = vld [vmem:[#allocation2 + $0x18] sm:$0xf]
    %v530 = vld [vmem:[#allocation2 + $0x1c] sm:$0xf]
    %v531 = vld [vmem:[#allocation2 + $0x20] sm:$0xf]
    %v532 = vld [vmem:[#allocation2 + $0x24] sm:$0xf]
    %v533 = vld [vmem:[#allocation2 + $0x28] sm:$0xf]
    %v534 = vld [vmem:[#allocation2 + $0x2c] sm:$0xf]
    %v535 = vld [vmem:[#allocation2 + $0x30] sm:$0xf]
    %v536 = vld [vmem:[#allocation2 + $0x34] sm:$0xf]
    %v537 = vld [vmem:[#allocation2 + $0x38] sm:$0xf]
    %v538 = vld [vmem:[#allocation2 + $0x3c] sm:$0xf]
    %v539 = vld [vmem:[#allocation9] sm:$0xff]
    %v540 = vld [vmem:[#allocation9 + $0x8] sm:$0xff]
    %v541 = vld [vmem:[#allocation9 + $0x10] sm:$0xff]
    %v542 = vld [vmem:[#allocation9 + $0x18] sm:$0xff]
    %v543 = vld [vmem:[#allocation9 + $0x20] sm:$0xff]
    %v544 = vld [vmem:[#allocation9 + $0x28] sm:$0xff]
    %v545 = vld [vmem:[#allocation9 + $0x30] sm:$0xff]
    %v546 = vld [vmem:[#allocation9 + $0x38] sm:$0xff]
    %v547 = vld [vmem:[#allocation9 + $0x40] sm:$0xff]
    %v548 = vld [vmem:[#allocation9 + $0x48] sm:$0xff]
    %v549 = vld [vmem:[#allocation9 + $0x50] sm:$0xff]
    %v550 = vld [vmem:[#allocation9 + $0x58] sm:$0xff]
    %v551 = vld [vmem:[#allocation9 + $0x60] sm:$0xff]
    %v552 = vld [vmem:[#allocation9 + $0x68] sm:$0xff]
    %v553 = vld [vmem:[#allocation9 + $0x70] sm:$0xff]
    %v554 = vld [vmem:[#allocation9 + $0x78] sm:$0xff]
    %v555 = vld [vmem:[%s4] sm:$0x3]
    %v557 = vperm.slane %v555, 0
    %v558 = vperm.slane %v555, 1
    %v577 = vunpack.c.l.b16 %v523
    %v578 = vunpack.c.l.b16 %v524
    %v579 = vunpack.c.l.b16 %v525
    %v580 = vunpack.c.l.b16 %v526
    %v581 = vunpack.c.l.b16 %v527
    %v582 = vunpack.c.l.b16 %v528
    %v583 = vunpack.c.l.b16 %v529
    %v584 = vunpack.c.l.b16 %v530
    %v585 = vunpack.c.l.b16 %v531
    %v586 = vunpack.c.l.b16 %v532
    %v587 = vunpack.c.l.b16 %v533
    %v588 = vunpack.c.l.b16 %v534
    %v589 = vunpack.c.l.b16 %v535
    %v590 = vunpack.c.l.b16 %v536
    %v591 = vunpack.c.l.b16 %v537
    %v592 = vunpack.c.l.b16 %v538
    %v593 = vpack.c.b16 %v578, %v577
    %v594 = vpack.c.b16 %v580, %v579
    %v595 = vpack.c.b16 %v582, %v581
    %v596 = vpack.c.b16 %v584, %v583
    %v597 = vpack.c.b16 %v586, %v585
    %v598 = vpack.c.b16 %v588, %v587
    %v599 = vpack.c.b16 %v590, %v589
    %v600 = vpack.c.b16 %v592, %v591
    %v625 = vunpack.c.l.b16 %v539
    %v626 = vunpack.c.h.b16 %v539
    %v627 = vunpack.c.l.b16 %v540
    %v628 = vunpack.c.h.b16 %v540
    %v629 = vunpack.c.l.b16 %v541
    %v630 = vunpack.c.h.b16 %v541
    %v631 = vunpack.c.l.b16 %v542
    %v632 = vunpack.c.h.b16 %v542
    %v633 = vunpack.c.l.b16 %v543
    %v634 = vunpack.c.h.b16 %v543
    %v635 = vunpack.c.l.b16 %v544
    %v636 = vunpack.c.h.b16 %v544
    %v637 = vunpack.c.l.b16 %v545
    %v638 = vunpack.c.h.b16 %v545
    %v639 = vunpack.c.l.b16 %v546
    %v640 = vunpack.c.h.b16 %v546
    %v641 = vunpack.c.l.b16 %v547
    %v642 = vunpack.c.h.b16 %v547
    %v643 = vunpack.c.l.b16 %v548
    %v644 = vunpack.c.h.b16 %v548
    %v645 = vunpack.c.l.b16 %v549
    %v646 = vunpack.c.h.b16 %v549
    %v647 = vunpack.c.l.b16 %v550
    %v648 = vunpack.c.h.b16 %v550
    %v649 = vunpack.c.l.b16 %v551
    %v650 = vunpack.c.h.b16 %v551
    %v651 = vunpack.c.l.b16 %v552
    %v652 = vunpack.c.h.b16 %v552
    %v653 = vunpack.c.l.b16 %v553
    %v654 = vunpack.c.h.b16 %v553
    %v655 = vunpack.c.l.b16 %v554
    %v656 = vunpack.c.h.b16 %v554
    %v657 = vpack.c.b16 %v627, %v625
    %v658 = vpack.c.b16 %v628, %v626
    %v659 = vpack.c.b16 %v631, %v629
    %v660 = vpack.c.b16 %v632, %v630
    %v661 = vpack.c.b16 %v635, %v633
    %v662 = vpack.c.b16 %v636, %v634
    %v663 = vpack.c.b16 %v639, %v637
    %v664 = vpack.c.b16 %v640, %v638
    %v665 = vpack.c.b16 %v643, %v641
    %v666 = vpack.c.b16 %v644, %v642
    %v667 = vpack.c.b16 %v647, %v645
    %v668 = vpack.c.b16 %v648, %v646
    %v669 = vpack.c.b16 %v651, %v649
    %v670 = vpack.c.b16 %v652, %v650
    %v671 = vpack.c.b16 %v655, %v653
    %v672 = vpack.c.b16 %v656, %v654
    %689 = vmatpush.bf16.msra.mxu0 %v671
    %690 = vmatpush.bf16.msra.mxu0 %v669
    %691 = vmatpush.bf16.msra.mxu0 %v667
    %692 = vmatpush.bf16.msra.mxu0 %v665
    %693 = vmatpush.bf16.msra.mxu0 %v663
    %694 = vmatpush.bf16.msra.mxu0 %v661
    %695 = vmatpush.bf16.msra.mxu0 %v659
    %696 = vmatpush.bf16.msra.mxu0 %v657
    %697 = vmatmul.bf16.gmra.mxu0 %v593
    %v698 = vpop.f32.mrf.mxu0
    %v699 = vadd.f32 %v557, %v698
    %v700 = vpop.f32.mrf.mxu0
    %v701 = vadd.f32 %v557, %v700
    %702 = vmatmul.bf16.gmra.mxu0 %v594
    %v703 = vpop.f32.mrf.mxu0
    %v704 = vadd.f32 %v557, %v703
    %v705 = vpop.f32.mrf.mxu0
    %v706 = vadd.f32 %v557, %v705
    %707 = vmatmul.bf16.gmra.mxu0 %v595
    %v708 = vpop.f32.mrf.mxu0
    %v709 = vadd.f32 %v557, %v708
    %v710 = vpop.f32.mrf.mxu0
    %v711 = vadd.f32 %v557, %v710
    %712 = vmatmul.bf16.gmra.mxu0 %v596
    %v713 = vpop.f32.mrf.mxu0
    %v714 = vadd.f32 %v557, %v713
    %v715 = vpop.f32.mrf.mxu0
    %v716 = vadd.f32 %v557, %v715
    %717 = vmatmul.bf16.gmra.mxu0 %v597
    %v718 = vpop.f32.mrf.mxu0
    %v719 = vadd.f32 %v557, %v718
    %v720 = vpop.f32.mrf.mxu0
    %v721 = vadd.f32 %v557, %v720
    %722 = vmatmul.bf16.gmra.mxu0 %v598
    %v723 = vpop.f32.mrf.mxu0
    %v724 = vadd.f32 %v557, %v723
    %v725 = vpop.f32.mrf.mxu0
    %v726 = vadd.f32 %v557, %v725
    %727 = vmatmul.bf16.gmra.mxu0 %v599
    %v728 = vpop.f32.mrf.mxu0
    %v729 = vadd.f32 %v557, %v728
    %v730 = vpop.f32.mrf.mxu0
    %v731 = vadd.f32 %v557, %v730
    %732 = vmatmul.bf16.gmra.mxu0 %v600
    %v733 = vpop.f32.mrf.mxu0
    %v734 = vadd.f32 %v557, %v733
    %v735 = vpop.f32.mrf.mxu0
    %v736 = vadd.f32 %v557, %v735
    %737 = vdwg.mxu0
    %738 = vmatpush.bf16.msra.mxu0 %v672
    %739 = vmatpush.bf16.msra.mxu0 %v670
    %740 = vmatpush.bf16.msra.mxu0 %v668
    %741 = vmatpush.bf16.msra.mxu0 %v666
    %742 = vmatpush.bf16.msra.mxu0 %v664
    %743 = vmatpush.bf16.msra.mxu0 %v662
    %744 = vmatpush.bf16.msra.mxu0 %v660
    %745 = vmatpush.bf16.msra.mxu0 %v658
    %746 = vmatmul.bf16.gmra.mxu0 %v593
    %v747 = vpop.f32.mrf.mxu0
    %v748 = vadd.f32 %v558, %v747
    %v749 = vpop.f32.mrf.mxu0
    %v750 = vadd.f32 %v558, %v749
    %751 = vmatmul.bf16.gmra.mxu0 %v594
    %v752 = vpop.f32.mrf.mxu0
    %v753 = vadd.f32 %v558, %v752
    %v754 = vpop.f32.mrf.mxu0
    %v755 = vadd.f32 %v558, %v754
    %756 = vmatmul.bf16.gmra.mxu0 %v595
    %v757 = vpop.f32.mrf.mxu0
    %v758 = vadd.f32 %v558, %v757
    %v759 = vpop.f32.mrf.mxu0
    %v760 = vadd.f32 %v558, %v759
    %761 = vmatmul.bf16.gmra.mxu0 %v596
    %v762 = vpop.f32.mrf.mxu0
    %v763 = vadd.f32 %v558, %v762
    %v764 = vpop.f32.mrf.mxu0
    %v765 = vadd.f32 %v558, %v764
    %766 = vmatmul.bf16.gmra.mxu0 %v597
    %v767 = vpop.f32.mrf.mxu0
    %v768 = vadd.f32 %v558, %v767
    %v769 = vpop.f32.mrf.mxu0
    %v770 = vadd.f32 %v558, %v769
    %771 = vmatmul.bf16.gmra.mxu0 %v598
    %v772 = vpop.f32.mrf.mxu0
    %v773 = vadd.f32 %v558, %v772
    %v774 = vpop.f32.mrf.mxu0
    %v775 = vadd.f32 %v558, %v774
    %776 = vmatmul.bf16.gmra.mxu0 %v599
    %v777 = vpop.f32.mrf.mxu0
    %v778 = vadd.f32 %v558, %v777
    %v779 = vpop.f32.mrf.mxu0
    %v780 = vadd.f32 %v558, %v779
    %781 = vmatmul.bf16.gmra.mxu0 %v600
    %v782 = vpop.f32.mrf.mxu0
    %v783 = vadd.f32 %v558, %v782
    %v784 = vpop.f32.mrf.mxu0
    %v785 = vadd.f32 %v558, %v784
    %786 = vdwg.mxu0
    %v787 = vmul.f32 %v699, 0.5
    %v788 = vmul.f32 %v748, 0.5
    %v789 = vmul.f32 %v701, 0.5
    %v790 = vmul.f32 %v750, 0.5
    %v791 = vmul.f32 %v704, 0.5
    %v792 = vmul.f32 %v753, 0.5
    %v793 = vmul.f32 %v706, 0.5
    %v794 = vmul.f32 %v755, 0.5
    %v795 = vmul.f32 %v709, 0.5
    %v796 = vmul.f32 %v758, 0.5
    %v797 = vmul.f32 %v711, 0.5
    %v798 = vmul.f32 %v760, 0.5
    %v799 = vmul.f32 %v714, 0.5
    %v800 = vmul.f32 %v763, 0.5
    %v801 = vmul.f32 %v716, 0.5
    %v802 = vmul.f32 %v765, 0.5
    %v803 = vmul.f32 %v719, 0.5
    %v804 = vmul.f32 %v768, 0.5
    %v805 = vmul.f32 %v721, 0.5
    %v806 = vmul.f32 %v770, 0.5
    %v807 = vmul.f32 %v724, 0.5
    %v808 = vmul.f32 %v773, 0.5
    %v809 = vmul.f32 %v726, 0.5
    %v810 = vmul.f32 %v775, 0.5
    %v811 = vmul.f32 %v729, 0.5
    %v812 = vmul.f32 %v778, 0.5
    %v813 = vmul.f32 %v731, 0.5
    %v814 = vmul.f32 %v780, 0.5
    %v815 = vmul.f32 %v734, 0.5
    %v816 = vmul.f32 %v783, 0.5
    %v817 = vmul.f32 %v736, 0.5
    %v818 = vmul.f32 %v785, 0.5
    %v819 = vmul.f32 %v699, 0.70710677
    %v820 = vmul.f32 %v748, 0.70710677
    %v821 = vmul.f32 %v701, 0.70710677
    %v822 = vmul.f32 %v750, 0.70710677
    %v823 = vmul.f32 %v704, 0.70710677
    %v824 = vmul.f32 %v753, 0.70710677
    %v825 = vmul.f32 %v706, 0.70710677
    %v826 = vmul.f32 %v755, 0.70710677
    %v827 = vmul.f32 %v709, 0.70710677
    %v828 = vmul.f32 %v758, 0.70710677
    %v829 = vmul.f32 %v711, 0.70710677
    %v830 = vmul.f32 %v760, 0.70710677
    %v831 = vmul.f32 %v714, 0.70710677
    %v832 = vmul.f32 %v763, 0.70710677
    %v833 = vmul.f32 %v716, 0.70710677
    %v834 = vmul.f32 %v765, 0.70710677
    %v835 = vmul.f32 %v719, 0.70710677
    %v836 = vmul.f32 %v768, 0.70710677
    %v837 = vmul.f32 %v721, 0.70710677
    %v838 = vmul.f32 %v770, 0.70710677
    %v839 = vmul.f32 %v724, 0.70710677
    %v840 = vmul.f32 %v773, 0.70710677
    %v841 = vmul.f32 %v726, 0.70710677
    %v842 = vmul.f32 %v775, 0.70710677
    %v843 = vmul.f32 %v729, 0.70710677
    %v844 = vmul.f32 %v778, 0.70710677
    %v845 = vmul.f32 %v731, 0.70710677
    %v846 = vmul.f32 %v780, 0.70710677
    %v847 = vmul.f32 %v734, 0.70710677
    %v848 = vmul.f32 %v783, 0.70710677
    %v849 = vmul.f32 %v736, 0.70710677
    %v850 = vmul.f32 %v785, 0.70710677
    %v851 = vmul.f32 %v819, %v819
    %v852 = vmin.f32 16.0, %v851
    %v853 = vmul.f32 %v852, 2.1237322e-06
    %v854 = vadd.f32 %v853, 0.00028619796
    %v855 = vmul.f32 %v852, %v854
    %v856 = vadd.f32 %v855, 0.0036580483
    %v857 = vmul.f32 %v852, %v856
    %v858 = vadd.f32 %v857, 0.05243302
    %v859 = vmul.f32 %v852, %v858
    %v860 = vadd.f32 %v859, 0.18741608
    %v861 = vmul.f32 %v852, %v860
    %v862 = vadd.f32 %v861, 1.1283791
    %v863 = vmul.f32 %v819, %v862
    %v864 = vmul.f32 %v852, 3.8918573e-05
    %v865 = vadd.f32 %v864, 0.001143296
    %v866 = vmul.f32 %v852, %v865
    %v867 = vadd.f32 %v866, 0.014752088
    %v868 = vmul.f32 %v852, %v867
    %v869 = vadd.f32 %v868, 0.112945676
    %v870 = vmul.f32 %v852, %v869
    %v871 = vadd.f32 %v870, 0.4994258
    %v872 = vmul.f32 %v852, %v871
    %v873 = vadd.f32 %v872, 1.0
    %v874 = vrcp.pop %v873
    %v875 = vmul.f32 %v873, %v874
    %v876 = vsub.f32 1.0, %v875
    %v877 = vmul.f32 %v874, %v876
    %v878 = vadd.f32 %v874, %v877
    %vm879 = vweird.f32 %v873
    %vm880 = vweird.f32 %v874
    %vm881 = vmor %vm879, %vm880
    %v882 = vsel %vm881, %v874, %v878
    %v883 = vand.u32 2147483647, %v873
    %vm884 = vcmp.eq.f32.partialorder %v883, 8.507059e+37
    %v885 = vand.u32 %v873, 2147483648
    %v886 = vor.u32 1.1754944e-38, %v885
    %v887 = vsel %vm884, %v886, %v882
    %v888 = vmul.f32 %v863, %v887
    %v889 = vmin.f32 %v888, 1.0
    %v890 = vmax.f32 %v889, -1.0
    %v891 = vmul.f32 %v820, %v820
    %v892 = vmin.f32 16.0, %v891
    %v893 = vmul.f32 %v892, 2.1237322e-06
    %v894 = vadd.f32 %v893, 0.00028619796
    %v895 = vmul.f32 %v892, %v894
    %v896 = vadd.f32 %v895, 0.0036580483
    %v897 = vmul.f32 %v892, %v896
    %v898 = vadd.f32 %v897, 0.05243302
    %v899 = vmul.f32 %v892, %v898
    %v900 = vadd.f32 %v899, 0.18741608
    %v901 = vmul.f32 %v892, %v900
    %v902 = vadd.f32 %v901, 1.1283791
    %v903 = vmul.f32 %v820, %v902
    %v904 = vmul.f32 %v892, 3.8918573e-05
    %v905 = vadd.f32 %v904, 0.001143296
    %v906 = vmul.f32 %v892, %v905
    %v907 = vadd.f32 %v906, 0.014752088
    %v908 = vmul.f32 %v892, %v907
    %v909 = vadd.f32 %v908, 0.112945676
    %v910 = vmul.f32 %v892, %v909
    %v911 = vadd.f32 %v910, 0.4994258
    %v912 = vmul.f32 %v892, %v911
    %v913 = vadd.f32 %v912, 1.0
    %v914 = vrcp.pop %v913
    %v915 = vmul.f32 %v913, %v914
    %v916 = vsub.f32 1.0, %v915
    %v917 = vmul.f32 %v914, %v916
    %v918 = vadd.f32 %v914, %v917
    %vm919 = vweird.f32 %v913
    %vm920 = vweird.f32 %v914
    %vm921 = vmor %vm919, %vm920
    %v922 = vsel %vm921, %v914, %v918
    %v923 = vand.u32 2147483647, %v913
    %vm924 = vcmp.eq.f32.partialorder %v923, 8.507059e+37
    %v925 = vand.u32 %v913, 2147483648
    %v926 = vor.u32 1.1754944e-38, %v925
    %v927 = vsel %vm924, %v926, %v922
    %v928 = vmul.f32 %v903, %v927
    %v929 = vmin.f32 %v928, 1.0
    %v930 = vmax.f32 %v929, -1.0
    %v931 = vmul.f32 %v821, %v821
    %v932 = vmin.f32 16.0, %v931
    %v933 = vmul.f32 %v932, 2.1237322e-06
    %v934 = vadd.f32 %v933, 0.00028619796
    %v935 = vmul.f32 %v932, %v934
    %v936 = vadd.f32 %v935, 0.0036580483
    %v937 = vmul.f32 %v932, %v936
    %v938 = vadd.f32 %v937, 0.05243302
    %v939 = vmul.f32 %v932, %v938
    %v940 = vadd.f32 %v939, 0.18741608
    %v941 = vmul.f32 %v932, %v940
    %v942 = vadd.f32 %v941, 1.1283791
    %v943 = vmul.f32 %v821, %v942
    %v944 = vmul.f32 %v932, 3.8918573e-05
    %v945 = vadd.f32 %v944, 0.001143296
    %v946 = vmul.f32 %v932, %v945
    %v947 = vadd.f32 %v946, 0.014752088
    %v948 = vmul.f32 %v932, %v947
    %v949 = vadd.f32 %v948, 0.112945676
    %v950 = vmul.f32 %v932, %v949
    %v951 = vadd.f32 %v950, 0.4994258
    %v952 = vmul.f32 %v932, %v951
    %v953 = vadd.f32 %v952, 1.0
    %v954 = vrcp.pop %v953
    %v955 = vmul.f32 %v953, %v954
    %v956 = vsub.f32 1.0, %v955
    %v957 = vmul.f32 %v954, %v956
    %v958 = vadd.f32 %v954, %v957
    %vm959 = vweird.f32 %v953
    %vm960 = vweird.f32 %v954
    %vm961 = vmor %vm959, %vm960
    %v962 = vsel %vm961, %v954, %v958
    %v963 = vand.u32 2147483647, %v953
    %vm964 = vcmp.eq.f32.partialorder %v963, 8.507059e+37
    %v965 = vand.u32 %v953, 2147483648
    %v966 = vor.u32 1.1754944e-38, %v965
    %v967 = vsel %vm964, %v966, %v962
    %v968 = vmul.f32 %v943, %v967
    %v969 = vmin.f32 %v968, 1.0
    %v970 = vmax.f32 %v969, -1.0
    %v971 = vmul.f32 %v822, %v822
    %v972 = vmin.f32 16.0, %v971
    %v973 = vmul.f32 %v972, 2.1237322e-06
    %v974 = vadd.f32 %v973, 0.00028619796
    %v975 = vmul.f32 %v972, %v974
    %v976 = vadd.f32 %v975, 0.0036580483
    %v977 = vmul.f32 %v972, %v976
    %v978 = vadd.f32 %v977, 0.05243302
    %v979 = vmul.f32 %v972, %v978
    %v980 = vadd.f32 %v979, 0.18741608
    %v981 = vmul.f32 %v972, %v980
    %v982 = vadd.f32 %v981, 1.1283791
    %v983 = vmul.f32 %v822, %v982
    %v984 = vmul.f32 %v972, 3.8918573e-05
    %v985 = vadd.f32 %v984, 0.001143296
    %v986 = vmul.f32 %v972, %v985
    %v987 = vadd.f32 %v986, 0.014752088
    %v988 = vmul.f32 %v972, %v987
    %v989 = vadd.f32 %v988, 0.112945676
    %v990 = vmul.f32 %v972, %v989
    %v991 = vadd.f32 %v990, 0.4994258
    %v992 = vmul.f32 %v972, %v991
    %v993 = vadd.f32 %v992, 1.0
    %v994 = vrcp.pop %v993
    %v995 = vmul.f32 %v993, %v994
    %v996 = vsub.f32 1.0, %v995
    %v997 = vmul.f32 %v994, %v996
    %v998 = vadd.f32 %v994, %v997
    %vm999 = vweird.f32 %v993
    %vm1000 = vweird.f32 %v994
    %vm1001 = vmor %vm999, %vm1000
    %v1002 = vsel %vm1001, %v994, %v998
    %v1003 = vand.u32 2147483647, %v993
    %vm1004 = vcmp.eq.f32.partialorder %v1003, 8.507059e+37
    %v1005 = vand.u32 %v993, 2147483648
    %v1006 = vor.u32 1.1754944e-38, %v1005
    %v1007 = vsel %vm1004, %v1006, %v1002
    %v1008 = vmul.f32 %v983, %v1007
    %v1009 = vmin.f32 %v1008, 1.0
    %v1010 = vmax.f32 %v1009, -1.0
    %v1011 = vmul.f32 %v823, %v823
    %v1012 = vmin.f32 16.0, %v1011
    %v1013 = vmul.f32 %v1012, 2.1237322e-06
    %v1014 = vadd.f32 %v1013, 0.00028619796
    %v1015 = vmul.f32 %v1012, %v1014
    %v1016 = vadd.f32 %v1015, 0.0036580483
    %v1017 = vmul.f32 %v1012, %v1016
    %v1018 = vadd.f32 %v1017, 0.05243302
    %v1019 = vmul.f32 %v1012, %v1018
    %v1020 = vadd.f32 %v1019, 0.18741608
    %v1021 = vmul.f32 %v1012, %v1020
    %v1022 = vadd.f32 %v1021, 1.1283791
    %v1023 = vmul.f32 %v823, %v1022
    %v1024 = vmul.f32 %v1012, 3.8918573e-05
    %v1025 = vadd.f32 %v1024, 0.001143296
    %v1026 = vmul.f32 %v1012, %v1025
    %v1027 = vadd.f32 %v1026, 0.014752088
    %v1028 = vmul.f32 %v1012, %v1027
    %v1029 = vadd.f32 %v1028, 0.112945676
    %v1030 = vmul.f32 %v1012, %v1029
    %v1031 = vadd.f32 %v1030, 0.4994258
    %v1032 = vmul.f32 %v1012, %v1031
    %v1033 = vadd.f32 %v1032, 1.0
    %v1034 = vrcp.pop %v1033
    %v1035 = vmul.f32 %v1033, %v1034
    %v1036 = vsub.f32 1.0, %v1035
    %v1037 = vmul.f32 %v1034, %v1036
    %v1038 = vadd.f32 %v1034, %v1037
    %vm1039 = vweird.f32 %v1033
    %vm1040 = vweird.f32 %v1034
    %vm1041 = vmor %vm1039, %vm1040
    %v1042 = vsel %vm1041, %v1034, %v1038
    %v1043 = vand.u32 2147483647, %v1033
    %vm1044 = vcmp.eq.f32.partialorder %v1043, 8.507059e+37
    %v1045 = vand.u32 %v1033, 2147483648
    %v1046 = vor.u32 1.1754944e-38, %v1045
    %v1047 = vsel %vm1044, %v1046, %v1042
    %v1048 = vmul.f32 %v1023, %v1047
    %v1049 = vmin.f32 %v1048, 1.0
    %v1050 = vmax.f32 %v1049, -1.0
    %v1051 = vmul.f32 %v824, %v824
    %v1052 = vmin.f32 16.0, %v1051
    %v1053 = vmul.f32 %v1052, 2.1237322e-06
    %v1054 = vadd.f32 %v1053, 0.00028619796
    %v1055 = vmul.f32 %v1052, %v1054
    %v1056 = vadd.f32 %v1055, 0.0036580483
    %v1057 = vmul.f32 %v1052, %v1056
    %v1058 = vadd.f32 %v1057, 0.05243302
    %v1059 = vmul.f32 %v1052, %v1058
    %v1060 = vadd.f32 %v1059, 0.18741608
    %v1061 = vmul.f32 %v1052, %v1060
    %v1062 = vadd.f32 %v1061, 1.1283791
    %v1063 = vmul.f32 %v824, %v1062
    %v1064 = vmul.f32 %v1052, 3.8918573e-05
    %v1065 = vadd.f32 %v1064, 0.001143296
    %v1066 = vmul.f32 %v1052, %v1065
    %v1067 = vadd.f32 %v1066, 0.014752088
    %v1068 = vmul.f32 %v1052, %v1067
    %v1069 = vadd.f32 %v1068, 0.112945676
    %v1070 = vmul.f32 %v1052, %v1069
    %v1071 = vadd.f32 %v1070, 0.4994258
    %v1072 = vmul.f32 %v1052, %v1071
    %v1073 = vadd.f32 %v1072, 1.0
    %v1074 = vrcp.pop %v1073
    %v1075 = vmul.f32 %v1073, %v1074
    %v1076 = vsub.f32 1.0, %v1075
    %v1077 = vmul.f32 %v1074, %v1076
    %v1078 = vadd.f32 %v1074, %v1077
    %vm1079 = vweird.f32 %v1073
    %vm1080 = vweird.f32 %v1074
    %vm1081 = vmor %vm1079, %vm1080
    %v1082 = vsel %vm1081, %v1074, %v1078
    %v1083 = vand.u32 2147483647, %v1073
    %vm1084 = vcmp.eq.f32.partialorder %v1083, 8.507059e+37
    %v1085 = vand.u32 %v1073, 2147483648
    %v1086 = vor.u32 1.1754944e-38, %v1085
    %v1087 = vsel %vm1084, %v1086, %v1082
    %v1088 = vmul.f32 %v1063, %v1087
    %v1089 = vmin.f32 %v1088, 1.0
    %v1090 = vmax.f32 %v1089, -1.0
    %v1091 = vmul.f32 %v825, %v825
    %v1092 = vmin.f32 16.0, %v1091
    %v1093 = vmul.f32 %v1092, 2.1237322e-06
    %v1094 = vadd.f32 %v1093, 0.00028619796
    %v1095 = vmul.f32 %v1092, %v1094
    %v1096 = vadd.f32 %v1095, 0.0036580483
    %v1097 = vmul.f32 %v1092, %v1096
    %v1098 = vadd.f32 %v1097, 0.05243302
    %v1099 = vmul.f32 %v1092, %v1098
    %v1100 = vadd.f32 %v1099, 0.18741608
    %v1101 = vmul.f32 %v1092, %v1100
    %v1102 = vadd.f32 %v1101, 1.1283791
    %v1103 = vmul.f32 %v825, %v1102
    %v1104 = vmul.f32 %v1092, 3.8918573e-05
    %v1105 = vadd.f32 %v1104, 0.001143296
    %v1106 = vmul.f32 %v1092, %v1105
    %v1107 = vadd.f32 %v1106, 0.014752088
    %v1108 = vmul.f32 %v1092, %v1107
    %v1109 = vadd.f32 %v1108, 0.112945676
    %v1110 = vmul.f32 %v1092, %v1109
    %v1111 = vadd.f32 %v1110, 0.4994258
    %v1112 = vmul.f32 %v1092, %v1111
    %v1113 = vadd.f32 %v1112, 1.0
    %v1114 = vrcp.pop %v1113
    %v1115 = vmul.f32 %v1113, %v1114
    %v1116 = vsub.f32 1.0, %v1115
    %v1117 = vmul.f32 %v1114, %v1116
    %v1118 = vadd.f32 %v1114, %v1117
    %vm1119 = vweird.f32 %v1113
    %vm1120 = vweird.f32 %v1114
    %vm1121 = vmor %vm1119, %vm1120
    %v1122 = vsel %vm1121, %v1114, %v1118
    %v1123 = vand.u32 2147483647, %v1113
    %vm1124 = vcmp.eq.f32.partialorder %v1123, 8.507059e+37
    %v1125 = vand.u32 %v1113, 2147483648
    %v1126 = vor.u32 1.1754944e-38, %v1125
    %v1127 = vsel %vm1124, %v1126, %v1122
    %v1128 = vmul.f32 %v1103, %v1127
    %v1129 = vmin.f32 %v1128, 1.0
    %v1130 = vmax.f32 %v1129, -1.0
    %v1131 = vmul.f32 %v826, %v826
    %v1132 = vmin.f32 16.0, %v1131
    %v1133 = vmul.f32 %v1132, 2.1237322e-06
    %v1134 = vadd.f32 %v1133, 0.00028619796
    %v1135 = vmul.f32 %v1132, %v1134
    %v1136 = vadd.f32 %v1135, 0.0036580483
    %v1137 = vmul.f32 %v1132, %v1136
    %v1138 = vadd.f32 %v1137, 0.05243302
    %v1139 = vmul.f32 %v1132, %v1138
    %v1140 = vadd.f32 %v1139, 0.18741608
    %v1141 = vmul.f32 %v1132, %v1140
    %v1142 = vadd.f32 %v1141, 1.1283791
    %v1143 = vmul.f32 %v826, %v1142
    %v1144 = vmul.f32 %v1132, 3.8918573e-05
    %v1145 = vadd.f32 %v1144, 0.001143296
    %v1146 = vmul.f32 %v1132, %v1145
    %v1147 = vadd.f32 %v1146, 0.014752088
    %v1148 = vmul.f32 %v1132, %v1147
    %v1149 = vadd.f32 %v1148, 0.112945676
    %v1150 = vmul.f32 %v1132, %v1149
    %v1151 = vadd.f32 %v1150, 0.4994258
    %v1152 = vmul.f32 %v1132, %v1151
    %v1153 = vadd.f32 %v1152, 1.0
    %v1154 = vrcp.pop %v1153
    %v1155 = vmul.f32 %v1153, %v1154
    %v1156 = vsub.f32 1.0, %v1155
    %v1157 = vmul.f32 %v1154, %v1156
    %v1158 = vadd.f32 %v1154, %v1157
    %vm1159 = vweird.f32 %v1153
    %vm1160 = vweird.f32 %v1154
    %vm1161 = vmor %vm1159, %vm1160
    %v1162 = vsel %vm1161, %v1154, %v1158
    %v1163 = vand.u32 2147483647, %v1153
    %vm1164 = vcmp.eq.f32.partialorder %v1163, 8.507059e+37
    %v1165 = vand.u32 %v1153, 2147483648
    %v1166 = vor.u32 1.1754944e-38, %v1165
    %v1167 = vsel %vm1164, %v1166, %v1162
    %v1168 = vmul.f32 %v1143, %v1167
    %v1169 = vmin.f32 %v1168, 1.0
    %v1170 = vmax.f32 %v1169, -1.0
    %v1171 = vmul.f32 %v827, %v827
    %v1172 = vmin.f32 16.0, %v1171
    %v1173 = vmul.f32 %v1172, 2.1237322e-06
    %v1174 = vadd.f32 %v1173, 0.00028619796
    %v1175 = vmul.f32 %v1172, %v1174
    %v1176 = vadd.f32 %v1175, 0.0036580483
    %v1177 = vmul.f32 %v1172, %v1176
    %v1178 = vadd.f32 %v1177, 0.05243302
    %v1179 = vmul.f32 %v1172, %v1178
    %v1180 = vadd.f32 %v1179, 0.18741608
    %v1181 = vmul.f32 %v1172, %v1180
    %v1182 = vadd.f32 %v1181, 1.1283791
    %v1183 = vmul.f32 %v827, %v1182
    %v1184 = vmul.f32 %v1172, 3.8918573e-05
    %v1185 = vadd.f32 %v1184, 0.001143296
    %v1186 = vmul.f32 %v1172, %v1185
    %v1187 = vadd.f32 %v1186, 0.014752088
    %v1188 = vmul.f32 %v1172, %v1187
    %v1189 = vadd.f32 %v1188, 0.112945676
    %v1190 = vmul.f32 %v1172, %v1189
    %v1191 = vadd.f32 %v1190, 0.4994258
    %v1192 = vmul.f32 %v1172, %v1191
    %v1193 = vadd.f32 %v1192, 1.0
    %v1194 = vrcp.pop %v1193
    %v1195 = vmul.f32 %v1193, %v1194
    %v1196 = vsub.f32 1.0, %v1195
    %v1197 = vmul.f32 %v1194, %v1196
    %v1198 = vadd.f32 %v1194, %v1197
    %vm1199 = vweird.f32 %v1193
    %vm1200 = vweird.f32 %v1194
    %vm1201 = vmor %vm1199, %vm1200
    %v1202 = vsel %vm1201, %v1194, %v1198
    %v1203 = vand.u32 2147483647, %v1193
    %vm1204 = vcmp.eq.f32.partialorder %v1203, 8.507059e+37
    %v1205 = vand.u32 %v1193, 2147483648
    %v1206 = vor.u32 1.1754944e-38, %v1205
    %v1207 = vsel %vm1204, %v1206, %v1202
    %v1208 = vmul.f32 %v1183, %v1207
    %v1209 = vmin.f32 %v1208, 1.0
    %v1210 = vmax.f32 %v1209, -1.0
    %v1211 = vmul.f32 %v828, %v828
    %v1212 = vmin.f32 16.0, %v1211
    %v1213 = vmul.f32 %v1212, 2.1237322e-06
    %v1214 = vadd.f32 %v1213, 0.00028619796
    %v1215 = vmul.f32 %v1212, %v1214
    %v1216 = vadd.f32 %v1215, 0.0036580483
    %v1217 = vmul.f32 %v1212, %v1216
    %v1218 = vadd.f32 %v1217, 0.05243302
    %v1219 = vmul.f32 %v1212, %v1218
    %v1220 = vadd.f32 %v1219, 0.18741608
    %v1221 = vmul.f32 %v1212, %v1220
    %v1222 = vadd.f32 %v1221, 1.1283791
    %v1223 = vmul.f32 %v828, %v1222
    %v1224 = vmul.f32 %v1212, 3.8918573e-05
    %v1225 = vadd.f32 %v1224, 0.001143296
    %v1226 = vmul.f32 %v1212, %v1225
    %v1227 = vadd.f32 %v1226, 0.014752088
    %v1228 = vmul.f32 %v1212, %v1227
    %v1229 = vadd.f32 %v1228, 0.112945676
    %v1230 = vmul.f32 %v1212, %v1229
    %v1231 = vadd.f32 %v1230, 0.4994258
    %v1232 = vmul.f32 %v1212, %v1231
    %v1233 = vadd.f32 %v1232, 1.0
    %v1234 = vrcp.pop %v1233
    %v1235 = vmul.f32 %v1233, %v1234
    %v1236 = vsub.f32 1.0, %v1235
    %v1237 = vmul.f32 %v1234, %v1236
    %v1238 = vadd.f32 %v1234, %v1237
    %vm1239 = vweird.f32 %v1233
    %vm1240 = vweird.f32 %v1234
    %vm1241 = vmor %vm1239, %vm1240
    %v1242 = vsel %vm1241, %v1234, %v1238
    %v1243 = vand.u32 2147483647, %v1233
    %vm1244 = vcmp.eq.f32.partialorder %v1243, 8.507059e+37
    %v1245 = vand.u32 %v1233, 2147483648
    %v1246 = vor.u32 1.1754944e-38, %v1245
    %v1247 = vsel %vm1244, %v1246, %v1242
    %v1248 = vmul.f32 %v1223, %v1247
    %v1249 = vmin.f32 %v1248, 1.0
    %v1250 = vmax.f32 %v1249, -1.0
    %v1251 = vmul.f32 %v829, %v829
    %v1252 = vmin.f32 16.0, %v1251
    %v1253 = vmul.f32 %v1252, 2.1237322e-06
    %v1254 = vadd.f32 %v1253, 0.00028619796
    %v1255 = vmul.f32 %v1252, %v1254
    %v1256 = vadd.f32 %v1255, 0.0036580483
    %v1257 = vmul.f32 %v1252, %v1256
    %v1258 = vadd.f32 %v1257, 0.05243302
    %v1259 = vmul.f32 %v1252, %v1258
    %v1260 = vadd.f32 %v1259, 0.18741608
    %v1261 = vmul.f32 %v1252, %v1260
    %v1262 = vadd.f32 %v1261, 1.1283791
    %v1263 = vmul.f32 %v829, %v1262
    %v1264 = vmul.f32 %v1252, 3.8918573e-05
    %v1265 = vadd.f32 %v1264, 0.001143296
    %v1266 = vmul.f32 %v1252, %v1265
    %v1267 = vadd.f32 %v1266, 0.014752088
    %v1268 = vmul.f32 %v1252, %v1267
    %v1269 = vadd.f32 %v1268, 0.112945676
    %v1270 = vmul.f32 %v1252, %v1269
    %v1271 = vadd.f32 %v1270, 0.4994258
    %v1272 = vmul.f32 %v1252, %v1271
    %v1273 = vadd.f32 %v1272, 1.0
    %v1274 = vrcp.pop %v1273
    %v1275 = vmul.f32 %v1273, %v1274
    %v1276 = vsub.f32 1.0, %v1275
    %v1277 = vmul.f32 %v1274, %v1276
    %v1278 = vadd.f32 %v1274, %v1277
    %vm1279 = vweird.f32 %v1273
    %vm1280 = vweird.f32 %v1274
    %vm1281 = vmor %vm1279, %vm1280
    %v1282 = vsel %vm1281, %v1274, %v1278
    %v1283 = vand.u32 2147483647, %v1273
    %vm1284 = vcmp.eq.f32.partialorder %v1283, 8.507059e+37
    %v1285 = vand.u32 %v1273, 2147483648
    %v1286 = vor.u32 1.1754944e-38, %v1285
    %v1287 = vsel %vm1284, %v1286, %v1282
    %v1288 = vmul.f32 %v1263, %v1287
    %v1289 = vmin.f32 %v1288, 1.0
    %v1290 = vmax.f32 %v1289, -1.0
    %v1291 = vmul.f32 %v830, %v830
    %v1292 = vmin.f32 16.0, %v1291
    %v1293 = vmul.f32 %v1292, 2.1237322e-06
    %v1294 = vadd.f32 %v1293, 0.00028619796
    %v1295 = vmul.f32 %v1292, %v1294
    %v1296 = vadd.f32 %v1295, 0.0036580483
    %v1297 = vmul.f32 %v1292, %v1296
    %v1298 = vadd.f32 %v1297, 0.05243302
    %v1299 = vmul.f32 %v1292, %v1298
    %v1300 = vadd.f32 %v1299, 0.18741608
    %v1301 = vmul.f32 %v1292, %v1300
    %v1302 = vadd.f32 %v1301, 1.1283791
    %v1303 = vmul.f32 %v830, %v1302
    %v1304 = vmul.f32 %v1292, 3.8918573e-05
    %v1305 = vadd.f32 %v1304, 0.001143296
    %v1306 = vmul.f32 %v1292, %v1305
    %v1307 = vadd.f32 %v1306, 0.014752088
    %v1308 = vmul.f32 %v1292, %v1307
    %v1309 = vadd.f32 %v1308, 0.112945676
    %v1310 = vmul.f32 %v1292, %v1309
    %v1311 = vadd.f32 %v1310, 0.4994258
    %v1312 = vmul.f32 %v1292, %v1311
    %v1313 = vadd.f32 %v1312, 1.0
    %v1314 = vrcp.pop %v1313
    %v1315 = vmul.f32 %v1313, %v1314
    %v1316 = vsub.f32 1.0, %v1315
    %v1317 = vmul.f32 %v1314, %v1316
    %v1318 = vadd.f32 %v1314, %v1317
    %vm1319 = vweird.f32 %v1313
    %vm1320 = vweird.f32 %v1314
    %vm1321 = vmor %vm1319, %vm1320
    %v1322 = vsel %vm1321, %v1314, %v1318
    %v1323 = vand.u32 2147483647, %v1313
    %vm1324 = vcmp.eq.f32.partialorder %v1323, 8.507059e+37
    %v1325 = vand.u32 %v1313, 2147483648
    %v1326 = vor.u32 1.1754944e-38, %v1325
    %v1327 = vsel %vm1324, %v1326, %v1322
    %v1328 = vmul.f32 %v1303, %v1327
    %v1329 = vmin.f32 %v1328, 1.0
    %v1330 = vmax.f32 %v1329, -1.0
    %v1331 = vmul.f32 %v831, %v831
    %v1332 = vmin.f32 16.0, %v1331
    %v1333 = vmul.f32 %v1332, 2.1237322e-06
    %v1334 = vadd.f32 %v1333, 0.00028619796
    %v1335 = vmul.f32 %v1332, %v1334
    %v1336 = vadd.f32 %v1335, 0.0036580483
    %v1337 = vmul.f32 %v1332, %v1336
    %v1338 = vadd.f32 %v1337, 0.05243302
    %v1339 = vmul.f32 %v1332, %v1338
    %v1340 = vadd.f32 %v1339, 0.18741608
    %v1341 = vmul.f32 %v1332, %v1340
    %v1342 = vadd.f32 %v1341, 1.1283791
    %v1343 = vmul.f32 %v831, %v1342
    %v1344 = vmul.f32 %v1332, 3.8918573e-05
    %v1345 = vadd.f32 %v1344, 0.001143296
    %v1346 = vmul.f32 %v1332, %v1345
    %v1347 = vadd.f32 %v1346, 0.014752088
    %v1348 = vmul.f32 %v1332, %v1347
    %v1349 = vadd.f32 %v1348, 0.112945676
    %v1350 = vmul.f32 %v1332, %v1349
    %v1351 = vadd.f32 %v1350, 0.4994258
    %v1352 = vmul.f32 %v1332, %v1351
    %v1353 = vadd.f32 %v1352, 1.0
    %v1354 = vrcp.pop %v1353
    %v1355 = vmul.f32 %v1353, %v1354
    %v1356 = vsub.f32 1.0, %v1355
    %v1357 = vmul.f32 %v1354, %v1356
    %v1358 = vadd.f32 %v1354, %v1357
    %vm1359 = vweird.f32 %v1353
    %vm1360 = vweird.f32 %v1354
    %vm1361 = vmor %vm1359, %vm1360
    %v1362 = vsel %vm1361, %v1354, %v1358
    %v1363 = vand.u32 2147483647, %v1353
    %vm1364 = vcmp.eq.f32.partialorder %v1363, 8.507059e+37
    %v1365 = vand.u32 %v1353, 2147483648
    %v1366 = vor.u32 1.1754944e-38, %v1365
    %v1367 = vsel %vm1364, %v1366, %v1362
    %v1368 = vmul.f32 %v1343, %v1367
    %v1369 = vmin.f32 %v1368, 1.0
    %v1370 = vmax.f32 %v1369, -1.0
    %v1371 = vmul.f32 %v832, %v832
    %v1372 = vmin.f32 16.0, %v1371
    %v1373 = vmul.f32 %v1372, 2.1237322e-06
    %v1374 = vadd.f32 %v1373, 0.00028619796
    %v1375 = vmul.f32 %v1372, %v1374
    %v1376 = vadd.f32 %v1375, 0.0036580483
    %v1377 = vmul.f32 %v1372, %v1376
    %v1378 = vadd.f32 %v1377, 0.05243302
    %v1379 = vmul.f32 %v1372, %v1378
    %v1380 = vadd.f32 %v1379, 0.18741608
    %v1381 = vmul.f32 %v1372, %v1380
    %v1382 = vadd.f32 %v1381, 1.1283791
    %v1383 = vmul.f32 %v832, %v1382
    %v1384 = vmul.f32 %v1372, 3.8918573e-05
    %v1385 = vadd.f32 %v1384, 0.001143296
    %v1386 = vmul.f32 %v1372, %v1385
    %v1387 = vadd.f32 %v1386, 0.014752088
    %v1388 = vmul.f32 %v1372, %v1387
    %v1389 = vadd.f32 %v1388, 0.112945676
    %v1390 = vmul.f32 %v1372, %v1389
    %v1391 = vadd.f32 %v1390, 0.4994258
    %v1392 = vmul.f32 %v1372, %v1391
    %v1393 = vadd.f32 %v1392, 1.0
    %v1394 = vrcp.pop %v1393
    %v1395 = vmul.f32 %v1393, %v1394
    %v1396 = vsub.f32 1.0, %v1395
    %v1397 = vmul.f32 %v1394, %v1396
    %v1398 = vadd.f32 %v1394, %v1397
    %vm1399 = vweird.f32 %v1393
    %vm1400 = vweird.f32 %v1394
    %vm1401 = vmor %vm1399, %vm1400
    %v1402 = vsel %vm1401, %v1394, %v1398
    %v1403 = vand.u32 2147483647, %v1393
    %vm1404 = vcmp.eq.f32.partialorder %v1403, 8.507059e+37
    %v1405 = vand.u32 %v1393, 2147483648
    %v1406 = vor.u32 1.1754944e-38, %v1405
    %v1407 = vsel %vm1404, %v1406, %v1402
    %v1408 = vmul.f32 %v1383, %v1407
    %v1409 = vmin.f32 %v1408, 1.0
    %v1410 = vmax.f32 %v1409, -1.0
    %v1411 = vmul.f32 %v833, %v833
    %v1412 = vmin.f32 16.0, %v1411
    %v1413 = vmul.f32 %v1412, 2.1237322e-06
    %v1414 = vadd.f32 %v1413, 0.00028619796
    %v1415 = vmul.f32 %v1412, %v1414
    %v1416 = vadd.f32 %v1415, 0.0036580483
    %v1417 = vmul.f32 %v1412, %v1416
    %v1418 = vadd.f32 %v1417, 0.05243302
    %v1419 = vmul.f32 %v1412, %v1418
    %v1420 = vadd.f32 %v1419, 0.18741608
    %v1421 = vmul.f32 %v1412, %v1420
    %v1422 = vadd.f32 %v1421, 1.1283791
    %v1423 = vmul.f32 %v833, %v1422
    %v1424 = vmul.f32 %v1412, 3.8918573e-05
    %v1425 = vadd.f32 %v1424, 0.001143296
    %v1426 = vmul.f32 %v1412, %v1425
    %v1427 = vadd.f32 %v1426, 0.014752088
    %v1428 = vmul.f32 %v1412, %v1427
    %v1429 = vadd.f32 %v1428, 0.112945676
    %v1430 = vmul.f32 %v1412, %v1429
    %v1431 = vadd.f32 %v1430, 0.4994258
    %v1432 = vmul.f32 %v1412, %v1431
    %v1433 = vadd.f32 %v1432, 1.0
    %v1434 = vrcp.pop %v1433
    %v1435 = vmul.f32 %v1433, %v1434
    %v1436 = vsub.f32 1.0, %v1435
    %v1437 = vmul.f32 %v1434, %v1436
    %v1438 = vadd.f32 %v1434, %v1437
    %vm1439 = vweird.f32 %v1433
    %vm1440 = vweird.f32 %v1434
    %vm1441 = vmor %vm1439, %vm1440
    %v1442 = vsel %vm1441, %v1434, %v1438
    %v1443 = vand.u32 2147483647, %v1433
    %vm1444 = vcmp.eq.f32.partialorder %v1443, 8.507059e+37
    %v1445 = vand.u32 %v1433, 2147483648
    %v1446 = vor.u32 1.1754944e-38, %v1445
    %v1447 = vsel %vm1444, %v1446, %v1442
    %v1448 = vmul.f32 %v1423, %v1447
    %v1449 = vmin.f32 %v1448, 1.0
    %v1450 = vmax.f32 %v1449, -1.0
    %v1451 = vmul.f32 %v834, %v834
    %v1452 = vmin.f32 16.0, %v1451
    %v1453 = vmul.f32 %v1452, 2.1237322e-06
    %v1454 = vadd.f32 %v1453, 0.00028619796
    %v1455 = vmul.f32 %v1452, %v1454
    %v1456 = vadd.f32 %v1455, 0.0036580483
    %v1457 = vmul.f32 %v1452, %v1456
    %v1458 = vadd.f32 %v1457, 0.05243302
    %v1459 = vmul.f32 %v1452, %v1458
    %v1460 = vadd.f32 %v1459, 0.18741608
    %v1461 = vmul.f32 %v1452, %v1460
    %v1462 = vadd.f32 %v1461, 1.1283791
    %v1463 = vmul.f32 %v834, %v1462
    %v1464 = vmul.f32 %v1452, 3.8918573e-05
    %v1465 = vadd.f32 %v1464, 0.001143296
    %v1466 = vmul.f32 %v1452, %v1465
    %v1467 = vadd.f32 %v1466, 0.014752088
    %v1468 = vmul.f32 %v1452, %v1467
    %v1469 = vadd.f32 %v1468, 0.112945676
    %v1470 = vmul.f32 %v1452, %v1469
    %v1471 = vadd.f32 %v1470, 0.4994258
    %v1472 = vmul.f32 %v1452, %v1471
    %v1473 = vadd.f32 %v1472, 1.0
    %v1474 = vrcp.pop %v1473
    %v1475 = vmul.f32 %v1473, %v1474
    %v1476 = vsub.f32 1.0, %v1475
    %v1477 = vmul.f32 %v1474, %v1476
    %v1478 = vadd.f32 %v1474, %v1477
    %vm1479 = vweird.f32 %v1473
    %vm1480 = vweird.f32 %v1474
    %vm1481 = vmor %vm1479, %vm1480
    %v1482 = vsel %vm1481, %v1474, %v1478
    %v1483 = vand.u32 2147483647, %v1473
    %vm1484 = vcmp.eq.f32.partialorder %v1483, 8.507059e+37
    %v1485 = vand.u32 %v1473, 2147483648
    %v1486 = vor.u32 1.1754944e-38, %v1485
    %v1487 = vsel %vm1484, %v1486, %v1482
    %v1488 = vmul.f32 %v1463, %v1487
    %v1489 = vmin.f32 %v1488, 1.0
    %v1490 = vmax.f32 %v1489, -1.0
    %v1491 = vmul.f32 %v835, %v835
    %v1492 = vmin.f32 16.0, %v1491
    %v1493 = vmul.f32 %v1492, 2.1237322e-06
    %v1494 = vadd.f32 %v1493, 0.00028619796
    %v1495 = vmul.f32 %v1492, %v1494
    %v1496 = vadd.f32 %v1495, 0.0036580483
    %v1497 = vmul.f32 %v1492, %v1496
    %v1498 = vadd.f32 %v1497, 0.05243302
    %v1499 = vmul.f32 %v1492, %v1498
    %v1500 = vadd.f32 %v1499, 0.18741608
    %v1501 = vmul.f32 %v1492, %v1500
    %v1502 = vadd.f32 %v1501, 1.1283791
    %v1503 = vmul.f32 %v835, %v1502
    %v1504 = vmul.f32 %v1492, 3.8918573e-05
    %v1505 = vadd.f32 %v1504, 0.001143296
    %v1506 = vmul.f32 %v1492, %v1505
    %v1507 = vadd.f32 %v1506, 0.014752088
    %v1508 = vmul.f32 %v1492, %v1507
    %v1509 = vadd.f32 %v1508, 0.112945676
    %v1510 = vmul.f32 %v1492, %v1509
    %v1511 = vadd.f32 %v1510, 0.4994258
    %v1512 = vmul.f32 %v1492, %v1511
    %v1513 = vadd.f32 %v1512, 1.0
    %v1514 = vrcp.pop %v1513
    %v1515 = vmul.f32 %v1513, %v1514
    %v1516 = vsub.f32 1.0, %v1515
    %v1517 = vmul.f32 %v1514, %v1516
    %v1518 = vadd.f32 %v1514, %v1517
    %vm1519 = vweird.f32 %v1513
    %vm1520 = vweird.f32 %v1514
    %vm1521 = vmor %vm1519, %vm1520
    %v1522 = vsel %vm1521, %v1514, %v1518
    %v1523 = vand.u32 2147483647, %v1513
    %vm1524 = vcmp.eq.f32.partialorder %v1523, 8.507059e+37
    %v1525 = vand.u32 %v1513, 2147483648
    %v1526 = vor.u32 1.1754944e-38, %v1525
    %v1527 = vsel %vm1524, %v1526, %v1522
    %v1528 = vmul.f32 %v1503, %v1527
    %v1529 = vmin.f32 %v1528, 1.0
    %v1530 = vmax.f32 %v1529, -1.0
    %v1531 = vmul.f32 %v836, %v836
    %v1532 = vmin.f32 16.0, %v1531
    %v1533 = vmul.f32 %v1532, 2.1237322e-06
    %v1534 = vadd.f32 %v1533, 0.00028619796
    %v1535 = vmul.f32 %v1532, %v1534
    %v1536 = vadd.f32 %v1535, 0.0036580483
    %v1537 = vmul.f32 %v1532, %v1536
    %v1538 = vadd.f32 %v1537, 0.05243302
    %v1539 = vmul.f32 %v1532, %v1538
    %v1540 = vadd.f32 %v1539, 0.18741608
    %v1541 = vmul.f32 %v1532, %v1540
    %v1542 = vadd.f32 %v1541, 1.1283791
    %v1543 = vmul.f32 %v836, %v1542
    %v1544 = vmul.f32 %v1532, 3.8918573e-05
    %v1545 = vadd.f32 %v1544, 0.001143296
    %v1546 = vmul.f32 %v1532, %v1545
    %v1547 = vadd.f32 %v1546, 0.014752088
    %v1548 = vmul.f32 %v1532, %v1547
    %v1549 = vadd.f32 %v1548, 0.112945676
    %v1550 = vmul.f32 %v1532, %v1549
    %v1551 = vadd.f32 %v1550, 0.4994258
    %v1552 = vmul.f32 %v1532, %v1551
    %v1553 = vadd.f32 %v1552, 1.0
    %v1554 = vrcp.pop %v1553
    %v1555 = vmul.f32 %v1553, %v1554
    %v1556 = vsub.f32 1.0, %v1555
    %v1557 = vmul.f32 %v1554, %v1556
    %v1558 = vadd.f32 %v1554, %v1557
    %vm1559 = vweird.f32 %v1553
    %vm1560 = vweird.f32 %v1554
    %vm1561 = vmor %vm1559, %vm1560
    %v1562 = vsel %vm1561, %v1554, %v1558
    %v1563 = vand.u32 2147483647, %v1553
    %vm1564 = vcmp.eq.f32.partialorder %v1563, 8.507059e+37
    %v1565 = vand.u32 %v1553, 2147483648
    %v1566 = vor.u32 1.1754944e-38, %v1565
    %v1567 = vsel %vm1564, %v1566, %v1562
    %v1568 = vmul.f32 %v1543, %v1567
    %v1569 = vmin.f32 %v1568, 1.0
    %v1570 = vmax.f32 %v1569, -1.0
    %v1571 = vmul.f32 %v837, %v837
    %v1572 = vmin.f32 16.0, %v1571
    %v1573 = vmul.f32 %v1572, 2.1237322e-06
    %v1574 = vadd.f32 %v1573, 0.00028619796
    %v1575 = vmul.f32 %v1572, %v1574
    %v1576 = vadd.f32 %v1575, 0.0036580483
    %v1577 = vmul.f32 %v1572, %v1576
    %v1578 = vadd.f32 %v1577, 0.05243302
    %v1579 = vmul.f32 %v1572, %v1578
    %v1580 = vadd.f32 %v1579, 0.18741608
    %v1581 = vmul.f32 %v1572, %v1580
    %v1582 = vadd.f32 %v1581, 1.1283791
    %v1583 = vmul.f32 %v837, %v1582
    %v1584 = vmul.f32 %v1572, 3.8918573e-05
    %v1585 = vadd.f32 %v1584, 0.001143296
    %v1586 = vmul.f32 %v1572, %v1585
    %v1587 = vadd.f32 %v1586, 0.014752088
    %v1588 = vmul.f32 %v1572, %v1587
    %v1589 = vadd.f32 %v1588, 0.112945676
    %v1590 = vmul.f32 %v1572, %v1589
    %v1591 = vadd.f32 %v1590, 0.4994258
    %v1592 = vmul.f32 %v1572, %v1591
    %v1593 = vadd.f32 %v1592, 1.0
    %v1594 = vrcp.pop %v1593
    %v1595 = vmul.f32 %v1593, %v1594
    %v1596 = vsub.f32 1.0, %v1595
    %v1597 = vmul.f32 %v1594, %v1596
    %v1598 = vadd.f32 %v1594, %v1597
    %vm1599 = vweird.f32 %v1593
    %vm1600 = vweird.f32 %v1594
    %vm1601 = vmor %vm1599, %vm1600
    %v1602 = vsel %vm1601, %v1594, %v1598
    %v1603 = vand.u32 2147483647, %v1593
    %vm1604 = vcmp.eq.f32.partialorder %v1603, 8.507059e+37
    %v1605 = vand.u32 %v1593, 2147483648
    %v1606 = vor.u32 1.1754944e-38, %v1605
    %v1607 = vsel %vm1604, %v1606, %v1602
    %v1608 = vmul.f32 %v1583, %v1607
    %v1609 = vmin.f32 %v1608, 1.0
    %v1610 = vmax.f32 %v1609, -1.0
    %v1611 = vmul.f32 %v838, %v838
    %v1612 = vmin.f32 16.0, %v1611
    %v1613 = vmul.f32 %v1612, 2.1237322e-06
    %v1614 = vadd.f32 %v1613, 0.00028619796
    %v1615 = vmul.f32 %v1612, %v1614
    %v1616 = vadd.f32 %v1615, 0.0036580483
    %v1617 = vmul.f32 %v1612, %v1616
    %v1618 = vadd.f32 %v1617, 0.05243302
    %v1619 = vmul.f32 %v1612, %v1618
    %v1620 = vadd.f32 %v1619, 0.18741608
    %v1621 = vmul.f32 %v1612, %v1620
    %v1622 = vadd.f32 %v1621, 1.1283791
    %v1623 = vmul.f32 %v838, %v1622
    %v1624 = vmul.f32 %v1612, 3.8918573e-05
    %v1625 = vadd.f32 %v1624, 0.001143296
    %v1626 = vmul.f32 %v1612, %v1625
    %v1627 = vadd.f32 %v1626, 0.014752088
    %v1628 = vmul.f32 %v1612, %v1627
    %v1629 = vadd.f32 %v1628, 0.112945676
    %v1630 = vmul.f32 %v1612, %v1629
    %v1631 = vadd.f32 %v1630, 0.4994258
    %v1632 = vmul.f32 %v1612, %v1631
    %v1633 = vadd.f32 %v1632, 1.0
    %v1634 = vrcp.pop %v1633
    %v1635 = vmul.f32 %v1633, %v1634
    %v1636 = vsub.f32 1.0, %v1635
    %v1637 = vmul.f32 %v1634, %v1636
    %v1638 = vadd.f32 %v1634, %v1637
    %vm1639 = vweird.f32 %v1633
    %vm1640 = vweird.f32 %v1634
    %vm1641 = vmor %vm1639, %vm1640
    %v1642 = vsel %vm1641, %v1634, %v1638
    %v1643 = vand.u32 2147483647, %v1633
    %vm1644 = vcmp.eq.f32.partialorder %v1643, 8.507059e+37
    %v1645 = vand.u32 %v1633, 2147483648
    %v1646 = vor.u32 1.1754944e-38, %v1645
    %v1647 = vsel %vm1644, %v1646, %v1642
    %v1648 = vmul.f32 %v1623, %v1647
    %v1649 = vmin.f32 %v1648, 1.0
    %v1650 = vmax.f32 %v1649, -1.0
    %v1651 = vmul.f32 %v839, %v839
    %v1652 = vmin.f32 16.0, %v1651
    %v1653 = vmul.f32 %v1652, 2.1237322e-06
    %v1654 = vadd.f32 %v1653, 0.00028619796
    %v1655 = vmul.f32 %v1652, %v1654
    %v1656 = vadd.f32 %v1655, 0.0036580483
    %v1657 = vmul.f32 %v1652, %v1656
    %v1658 = vadd.f32 %v1657, 0.05243302
    %v1659 = vmul.f32 %v1652, %v1658
    %v1660 = vadd.f32 %v1659, 0.18741608
    %v1661 = vmul.f32 %v1652, %v1660
    %v1662 = vadd.f32 %v1661, 1.1283791
    %v1663 = vmul.f32 %v839, %v1662
    %v1664 = vmul.f32 %v1652, 3.8918573e-05
    %v1665 = vadd.f32 %v1664, 0.001143296
    %v1666 = vmul.f32 %v1652, %v1665
    %v1667 = vadd.f32 %v1666, 0.014752088
    %v1668 = vmul.f32 %v1652, %v1667
    %v1669 = vadd.f32 %v1668, 0.112945676
    %v1670 = vmul.f32 %v1652, %v1669
    %v1671 = vadd.f32 %v1670, 0.4994258
    %v1672 = vmul.f32 %v1652, %v1671
    %v1673 = vadd.f32 %v1672, 1.0
    %v1674 = vrcp.pop %v1673
    %v1675 = vmul.f32 %v1673, %v1674
    %v1676 = vsub.f32 1.0, %v1675
    %v1677 = vmul.f32 %v1674, %v1676
    %v1678 = vadd.f32 %v1674, %v1677
    %vm1679 = vweird.f32 %v1673
    %vm1680 = vweird.f32 %v1674
    %vm1681 = vmor %vm1679, %vm1680
    %v1682 = vsel %vm1681, %v1674, %v1678
    %v1683 = vand.u32 2147483647, %v1673
    %vm1684 = vcmp.eq.f32.partialorder %v1683, 8.507059e+37
    %v1685 = vand.u32 %v1673, 2147483648
    %v1686 = vor.u32 1.1754944e-38, %v1685
    %v1687 = vsel %vm1684, %v1686, %v1682
    %v1688 = vmul.f32 %v1663, %v1687
    %v1689 = vmin.f32 %v1688, 1.0
    %v1690 = vmax.f32 %v1689, -1.0
    %v1691 = vmul.f32 %v840, %v840
    %v1692 = vmin.f32 16.0, %v1691
    %v1693 = vmul.f32 %v1692, 2.1237322e-06
    %v1694 = vadd.f32 %v1693, 0.00028619796
    %v1695 = vmul.f32 %v1692, %v1694
    %v1696 = vadd.f32 %v1695, 0.0036580483
    %v1697 = vmul.f32 %v1692, %v1696
    %v1698 = vadd.f32 %v1697, 0.05243302
    %v1699 = vmul.f32 %v1692, %v1698
    %v1700 = vadd.f32 %v1699, 0.18741608
    %v1701 = vmul.f32 %v1692, %v1700
    %v1702 = vadd.f32 %v1701, 1.1283791
    %v1703 = vmul.f32 %v840, %v1702
    %v1704 = vmul.f32 %v1692, 3.8918573e-05
    %v1705 = vadd.f32 %v1704, 0.001143296
    %v1706 = vmul.f32 %v1692, %v1705
    %v1707 = vadd.f32 %v1706, 0.014752088
    %v1708 = vmul.f32 %v1692, %v1707
    %v1709 = vadd.f32 %v1708, 0.112945676
    %v1710 = vmul.f32 %v1692, %v1709
    %v1711 = vadd.f32 %v1710, 0.4994258
    %v1712 = vmul.f32 %v1692, %v1711
    %v1713 = vadd.f32 %v1712, 1.0
    %v1714 = vrcp.pop %v1713
    %v1715 = vmul.f32 %v1713, %v1714
    %v1716 = vsub.f32 1.0, %v1715
    %v1717 = vmul.f32 %v1714, %v1716
    %v1718 = vadd.f32 %v1714, %v1717
    %vm1719 = vweird.f32 %v1713
    %vm1720 = vweird.f32 %v1714
    %vm1721 = vmor %vm1719, %vm1720
    %v1722 = vsel %vm1721, %v1714, %v1718
    %v1723 = vand.u32 2147483647, %v1713
    %vm1724 = vcmp.eq.f32.partialorder %v1723, 8.507059e+37
    %v1725 = vand.u32 %v1713, 2147483648
    %v1726 = vor.u32 1.1754944e-38, %v1725
    %v1727 = vsel %vm1724, %v1726, %v1722
    %v1728 = vmul.f32 %v1703, %v1727
    %v1729 = vmin.f32 %v1728, 1.0
    %v1730 = vmax.f32 %v1729, -1.0
    %v1731 = vmul.f32 %v841, %v841
    %v1732 = vmin.f32 16.0, %v1731
    %v1733 = vmul.f32 %v1732, 2.1237322e-06
    %v1734 = vadd.f32 %v1733, 0.00028619796
    %v1735 = vmul.f32 %v1732, %v1734
    %v1736 = vadd.f32 %v1735, 0.0036580483
    %v1737 = vmul.f32 %v1732, %v1736
    %v1738 = vadd.f32 %v1737, 0.05243302
    %v1739 = vmul.f32 %v1732, %v1738
    %v1740 = vadd.f32 %v1739, 0.18741608
    %v1741 = vmul.f32 %v1732, %v1740
    %v1742 = vadd.f32 %v1741, 1.1283791
    %v1743 = vmul.f32 %v841, %v1742
    %v1744 = vmul.f32 %v1732, 3.8918573e-05
    %v1745 = vadd.f32 %v1744, 0.001143296
    %v1746 = vmul.f32 %v1732, %v1745
    %v1747 = vadd.f32 %v1746, 0.014752088
    %v1748 = vmul.f32 %v1732, %v1747
    %v1749 = vadd.f32 %v1748, 0.112945676
    %v1750 = vmul.f32 %v1732, %v1749
    %v1751 = vadd.f32 %v1750, 0.4994258
    %v1752 = vmul.f32 %v1732, %v1751
    %v1753 = vadd.f32 %v1752, 1.0
    %v1754 = vrcp.pop %v1753
    %v1755 = vmul.f32 %v1753, %v1754
    %v1756 = vsub.f32 1.0, %v1755
    %v1757 = vmul.f32 %v1754, %v1756
    %v1758 = vadd.f32 %v1754, %v1757
    %vm1759 = vweird.f32 %v1753
    %vm1760 = vweird.f32 %v1754
    %vm1761 = vmor %vm1759, %vm1760
    %v1762 = vsel %vm1761, %v1754, %v1758
    %v1763 = vand.u32 2147483647, %v1753
    %vm1764 = vcmp.eq.f32.partialorder %v1763, 8.507059e+37
    %v1765 = vand.u32 %v1753, 2147483648
    %v1766 = vor.u32 1.1754944e-38, %v1765
    %v1767 = vsel %vm1764, %v1766, %v1762
    %v1768 = vmul.f32 %v1743, %v1767
    %v1769 = vmin.f32 %v1768, 1.0
    %v1770 = vmax.f32 %v1769, -1.0
    %v1771 = vmul.f32 %v842, %v842
    %v1772 = vmin.f32 16.0, %v1771
    %v1773 = vmul.f32 %v1772, 2.1237322e-06
    %v1774 = vadd.f32 %v1773, 0.00028619796
    %v1775 = vmul.f32 %v1772, %v1774
    %v1776 = vadd.f32 %v1775, 0.0036580483
    %v1777 = vmul.f32 %v1772, %v1776
    %v1778 = vadd.f32 %v1777, 0.05243302
    %v1779 = vmul.f32 %v1772, %v1778
    %v1780 = vadd.f32 %v1779, 0.18741608
    %v1781 = vmul.f32 %v1772, %v1780
    %v1782 = vadd.f32 %v1781, 1.1283791
    %v1783 = vmul.f32 %v842, %v1782
    %v1784 = vmul.f32 %v1772, 3.8918573e-05
    %v1785 = vadd.f32 %v1784, 0.001143296
    %v1786 = vmul.f32 %v1772, %v1785
    %v1787 = vadd.f32 %v1786, 0.014752088
    %v1788 = vmul.f32 %v1772, %v1787
    %v1789 = vadd.f32 %v1788, 0.112945676
    %v1790 = vmul.f32 %v1772, %v1789
    %v1791 = vadd.f32 %v1790, 0.4994258
    %v1792 = vmul.f32 %v1772, %v1791
    %v1793 = vadd.f32 %v1792, 1.0
    %v1794 = vrcp.pop %v1793
    %v1795 = vmul.f32 %v1793, %v1794
    %v1796 = vsub.f32 1.0, %v1795
    %v1797 = vmul.f32 %v1794, %v1796
    %v1798 = vadd.f32 %v1794, %v1797
    %vm1799 = vweird.f32 %v1793
    %vm1800 = vweird.f32 %v1794
    %vm1801 = vmor %vm1799, %vm1800
    %v1802 = vsel %vm1801, %v1794, %v1798
    %v1803 = vand.u32 2147483647, %v1793
    %vm1804 = vcmp.eq.f32.partialorder %v1803, 8.507059e+37
    %v1805 = vand.u32 %v1793, 2147483648
    %v1806 = vor.u32 1.1754944e-38, %v1805
    %v1807 = vsel %vm1804, %v1806, %v1802
    %v1808 = vmul.f32 %v1783, %v1807
    %v1809 = vmin.f32 %v1808, 1.0
    %v1810 = vmax.f32 %v1809, -1.0
    %v1811 = vmul.f32 %v843, %v843
    %v1812 = vmin.f32 16.0, %v1811
    %v1813 = vmul.f32 %v1812, 2.1237322e-06
    %v1814 = vadd.f32 %v1813, 0.00028619796
    %v1815 = vmul.f32 %v1812, %v1814
    %v1816 = vadd.f32 %v1815, 0.0036580483
    %v1817 = vmul.f32 %v1812, %v1816
    %v1818 = vadd.f32 %v1817, 0.05243302
    %v1819 = vmul.f32 %v1812, %v1818
    %v1820 = vadd.f32 %v1819, 0.18741608
    %v1821 = vmul.f32 %v1812, %v1820
    %v1822 = vadd.f32 %v1821, 1.1283791
    %v1823 = vmul.f32 %v843, %v1822
    %v1824 = vmul.f32 %v1812, 3.8918573e-05
    %v1825 = vadd.f32 %v1824, 0.001143296
    %v1826 = vmul.f32 %v1812, %v1825
    %v1827 = vadd.f32 %v1826, 0.014752088
    %v1828 = vmul.f32 %v1812, %v1827
    %v1829 = vadd.f32 %v1828, 0.112945676
    %v1830 = vmul.f32 %v1812, %v1829
    %v1831 = vadd.f32 %v1830, 0.4994258
    %v1832 = vmul.f32 %v1812, %v1831
    %v1833 = vadd.f32 %v1832, 1.0
    %v1834 = vrcp.pop %v1833
    %v1835 = vmul.f32 %v1833, %v1834
    %v1836 = vsub.f32 1.0, %v1835
    %v1837 = vmul.f32 %v1834, %v1836
    %v1838 = vadd.f32 %v1834, %v1837
    %vm1839 = vweird.f32 %v1833
    %vm1840 = vweird.f32 %v1834
    %vm1841 = vmor %vm1839, %vm1840
    %v1842 = vsel %vm1841, %v1834, %v1838
    %v1843 = vand.u32 2147483647, %v1833
    %vm1844 = vcmp.eq.f32.partialorder %v1843, 8.507059e+37
    %v1845 = vand.u32 %v1833, 2147483648
    %v1846 = vor.u32 1.1754944e-38, %v1845
    %v1847 = vsel %vm1844, %v1846, %v1842
    %v1848 = vmul.f32 %v1823, %v1847
    %v1849 = vmin.f32 %v1848, 1.0
    %v1850 = vmax.f32 %v1849, -1.0
    %v1851 = vmul.f32 %v844, %v844
    %v1852 = vmin.f32 16.0, %v1851
    %v1853 = vmul.f32 %v1852, 2.1237322e-06
    %v1854 = vadd.f32 %v1853, 0.00028619796
    %v1855 = vmul.f32 %v1852, %v1854
    %v1856 = vadd.f32 %v1855, 0.0036580483
    %v1857 = vmul.f32 %v1852, %v1856
    %v1858 = vadd.f32 %v1857, 0.05243302
    %v1859 = vmul.f32 %v1852, %v1858
    %v1860 = vadd.f32 %v1859, 0.18741608
    %v1861 = vmul.f32 %v1852, %v1860
    %v1862 = vadd.f32 %v1861, 1.1283791
    %v1863 = vmul.f32 %v844, %v1862
    %v1864 = vmul.f32 %v1852, 3.8918573e-05
    %v1865 = vadd.f32 %v1864, 0.001143296
    %v1866 = vmul.f32 %v1852, %v1865
    %v1867 = vadd.f32 %v1866, 0.014752088
    %v1868 = vmul.f32 %v1852, %v1867
    %v1869 = vadd.f32 %v1868, 0.112945676
    %v1870 = vmul.f32 %v1852, %v1869
    %v1871 = vadd.f32 %v1870, 0.4994258
    %v1872 = vmul.f32 %v1852, %v1871
    %v1873 = vadd.f32 %v1872, 1.0
    %v1874 = vrcp.pop %v1873
    %v1875 = vmul.f32 %v1873, %v1874
    %v1876 = vsub.f32 1.0, %v1875
    %v1877 = vmul.f32 %v1874, %v1876
    %v1878 = vadd.f32 %v1874, %v1877
    %vm1879 = vweird.f32 %v1873
    %vm1880 = vweird.f32 %v1874
    %vm1881 = vmor %vm1879, %vm1880
    %v1882 = vsel %vm1881, %v1874, %v1878
    %v1883 = vand.u32 2147483647, %v1873
    %vm1884 = vcmp.eq.f32.partialorder %v1883, 8.507059e+37
    %v1885 = vand.u32 %v1873, 2147483648
    %v1886 = vor.u32 1.1754944e-38, %v1885
    %v1887 = vsel %vm1884, %v1886, %v1882
    %v1888 = vmul.f32 %v1863, %v1887
    %v1889 = vmin.f32 %v1888, 1.0
    %v1890 = vmax.f32 %v1889, -1.0
    %v1891 = vmul.f32 %v845, %v845
    %v1892 = vmin.f32 16.0, %v1891
    %v1893 = vmul.f32 %v1892, 2.1237322e-06
    %v1894 = vadd.f32 %v1893, 0.00028619796
    %v1895 = vmul.f32 %v1892, %v1894
    %v1896 = vadd.f32 %v1895, 0.0036580483
    %v1897 = vmul.f32 %v1892, %v1896
    %v1898 = vadd.f32 %v1897, 0.05243302
    %v1899 = vmul.f32 %v1892, %v1898
    %v1900 = vadd.f32 %v1899, 0.18741608
    %v1901 = vmul.f32 %v1892, %v1900
    %v1902 = vadd.f32 %v1901, 1.1283791
    %v1903 = vmul.f32 %v845, %v1902
    %v1904 = vmul.f32 %v1892, 3.8918573e-05
    %v1905 = vadd.f32 %v1904, 0.001143296
    %v1906 = vmul.f32 %v1892, %v1905
    %v1907 = vadd.f32 %v1906, 0.014752088
    %v1908 = vmul.f32 %v1892, %v1907
    %v1909 = vadd.f32 %v1908, 0.112945676
    %v1910 = vmul.f32 %v1892, %v1909
    %v1911 = vadd.f32 %v1910, 0.4994258
    %v1912 = vmul.f32 %v1892, %v1911
    %v1913 = vadd.f32 %v1912, 1.0
    %v1914 = vrcp.pop %v1913
    %v1915 = vmul.f32 %v1913, %v1914
    %v1916 = vsub.f32 1.0, %v1915
    %v1917 = vmul.f32 %v1914, %v1916
    %v1918 = vadd.f32 %v1914, %v1917
    %vm1919 = vweird.f32 %v1913
    %vm1920 = vweird.f32 %v1914
    %vm1921 = vmor %vm1919, %vm1920
    %v1922 = vsel %vm1921, %v1914, %v1918
    %v1923 = vand.u32 2147483647, %v1913
    %vm1924 = vcmp.eq.f32.partialorder %v1923, 8.507059e+37
    %v1925 = vand.u32 %v1913, 2147483648
    %v1926 = vor.u32 1.1754944e-38, %v1925
    %v1927 = vsel %vm1924, %v1926, %v1922
    %v1928 = vmul.f32 %v1903, %v1927
    %v1929 = vmin.f32 %v1928, 1.0
    %v1930 = vmax.f32 %v1929, -1.0
    %v1931 = vmul.f32 %v846, %v846
    %v1932 = vmin.f32 16.0, %v1931
    %v1933 = vmul.f32 %v1932, 2.1237322e-06
    %v1934 = vadd.f32 %v1933, 0.00028619796
    %v1935 = vmul.f32 %v1932, %v1934
    %v1936 = vadd.f32 %v1935, 0.0036580483
    %v1937 = vmul.f32 %v1932, %v1936
    %v1938 = vadd.f32 %v1937, 0.05243302
    %v1939 = vmul.f32 %v1932, %v1938
    %v1940 = vadd.f32 %v1939, 0.18741608
    %v1941 = vmul.f32 %v1932, %v1940
    %v1942 = vadd.f32 %v1941, 1.1283791
    %v1943 = vmul.f32 %v846, %v1942
    %v1944 = vmul.f32 %v1932, 3.8918573e-05
    %v1945 = vadd.f32 %v1944, 0.001143296
    %v1946 = vmul.f32 %v1932, %v1945
    %v1947 = vadd.f32 %v1946, 0.014752088
    %v1948 = vmul.f32 %v1932, %v1947
    %v1949 = vadd.f32 %v1948, 0.112945676
    %v1950 = vmul.f32 %v1932, %v1949
    %v1951 = vadd.f32 %v1950, 0.4994258
    %v1952 = vmul.f32 %v1932, %v1951
    %v1953 = vadd.f32 %v1952, 1.0
    %v1954 = vrcp.pop %v1953
    %v1955 = vmul.f32 %v1953, %v1954
    %v1956 = vsub.f32 1.0, %v1955
    %v1957 = vmul.f32 %v1954, %v1956
    %v1958 = vadd.f32 %v1954, %v1957
    %vm1959 = vweird.f32 %v1953
    %vm1960 = vweird.f32 %v1954
    %vm1961 = vmor %vm1959, %vm1960
    %v1962 = vsel %vm1961, %v1954, %v1958
    %v1963 = vand.u32 2147483647, %v1953
    %vm1964 = vcmp.eq.f32.partialorder %v1963, 8.507059e+37
    %v1965 = vand.u32 %v1953, 2147483648
    %v1966 = vor.u32 1.1754944e-38, %v1965
    %v1967 = vsel %vm1964, %v1966, %v1962
    %v1968 = vmul.f32 %v1943, %v1967
    %v1969 = vmin.f32 %v1968, 1.0
    %v1970 = vmax.f32 %v1969, -1.0
    %v1971 = vmul.f32 %v847, %v847
    %v1972 = vmin.f32 16.0, %v1971
    %v1973 = vmul.f32 %v1972, 2.1237322e-06
    %v1974 = vadd.f32 %v1973, 0.00028619796
    %v1975 = vmul.f32 %v1972, %v1974
    %v1976 = vadd.f32 %v1975, 0.0036580483
    %v1977 = vmul.f32 %v1972, %v1976
    %v1978 = vadd.f32 %v1977, 0.05243302
    %v1979 = vmul.f32 %v1972, %v1978
    %v1980 = vadd.f32 %v1979, 0.18741608
    %v1981 = vmul.f32 %v1972, %v1980
    %v1982 = vadd.f32 %v1981, 1.1283791
    %v1983 = vmul.f32 %v847, %v1982
    %v1984 = vmul.f32 %v1972, 3.8918573e-05
    %v1985 = vadd.f32 %v1984, 0.001143296
    %v1986 = vmul.f32 %v1972, %v1985
    %v1987 = vadd.f32 %v1986, 0.014752088
    %v1988 = vmul.f32 %v1972, %v1987
    %v1989 = vadd.f32 %v1988, 0.112945676
    %v1990 = vmul.f32 %v1972, %v1989
    %v1991 = vadd.f32 %v1990, 0.4994258
    %v1992 = vmul.f32 %v1972, %v1991
    %v1993 = vadd.f32 %v1992, 1.0
    %v1994 = vrcp.pop %v1993
    %v1995 = vmul.f32 %v1993, %v1994
    %v1996 = vsub.f32 1.0, %v1995
    %v1997 = vmul.f32 %v1994, %v1996
    %v1998 = vadd.f32 %v1994, %v1997
    %vm1999 = vweird.f32 %v1993
    %vm2000 = vweird.f32 %v1994
    %vm2001 = vmor %vm1999, %vm2000
    %v2002 = vsel %vm2001, %v1994, %v1998
    %v2003 = vand.u32 2147483647, %v1993
    %vm2004 = vcmp.eq.f32.partialorder %v2003, 8.507059e+37
    %v2005 = vand.u32 %v1993, 2147483648
    %v2006 = vor.u32 1.1754944e-38, %v2005
    %v2007 = vsel %vm2004, %v2006, %v2002
    %v2008 = vmul.f32 %v1983, %v2007
    %v2009 = vmin.f32 %v2008, 1.0
    %v2010 = vmax.f32 %v2009, -1.0
    %v2011 = vmul.f32 %v848, %v848
    %v2012 = vmin.f32 16.0, %v2011
    %v2013 = vmul.f32 %v2012, 2.1237322e-06
    %v2014 = vadd.f32 %v2013, 0.00028619796
    %v2015 = vmul.f32 %v2012, %v2014
    %v2016 = vadd.f32 %v2015, 0.0036580483
    %v2017 = vmul.f32 %v2012, %v2016
    %v2018 = vadd.f32 %v2017, 0.05243302
    %v2019 = vmul.f32 %v2012, %v2018
    %v2020 = vadd.f32 %v2019, 0.18741608
    %v2021 = vmul.f32 %v2012, %v2020
    %v2022 = vadd.f32 %v2021, 1.1283791
    %v2023 = vmul.f32 %v848, %v2022
    %v2024 = vmul.f32 %v2012, 3.8918573e-05
    %v2025 = vadd.f32 %v2024, 0.001143296
    %v2026 = vmul.f32 %v2012, %v2025
    %v2027 = vadd.f32 %v2026, 0.014752088
    %v2028 = vmul.f32 %v2012, %v2027
    %v2029 = vadd.f32 %v2028, 0.112945676
    %v2030 = vmul.f32 %v2012, %v2029
    %v2031 = vadd.f32 %v2030, 0.4994258
    %v2032 = vmul.f32 %v2012, %v2031
    %v2033 = vadd.f32 %v2032, 1.0
    %v2034 = vrcp.pop %v2033
    %v2035 = vmul.f32 %v2033, %v2034
    %v2036 = vsub.f32 1.0, %v2035
    %v2037 = vmul.f32 %v2034, %v2036
    %v2038 = vadd.f32 %v2034, %v2037
    %vm2039 = vweird.f32 %v2033
    %vm2040 = vweird.f32 %v2034
    %vm2041 = vmor %vm2039, %vm2040
    %v2042 = vsel %vm2041, %v2034, %v2038
    %v2043 = vand.u32 2147483647, %v2033
    %vm2044 = vcmp.eq.f32.partialorder %v2043, 8.507059e+37
    %v2045 = vand.u32 %v2033, 2147483648
    %v2046 = vor.u32 1.1754944e-38, %v2045
    %v2047 = vsel %vm2044, %v2046, %v2042
    %v2048 = vmul.f32 %v2023, %v2047
    %v2049 = vmin.f32 %v2048, 1.0
    %v2050 = vmax.f32 %v2049, -1.0
    %v2051 = vmul.f32 %v849, %v849
    %v2052 = vmin.f32 16.0, %v2051
    %v2053 = vmul.f32 %v2052, 2.1237322e-06
    %v2054 = vadd.f32 %v2053, 0.00028619796
    %v2055 = vmul.f32 %v2052, %v2054
    %v2056 = vadd.f32 %v2055, 0.0036580483
    %v2057 = vmul.f32 %v2052, %v2056
    %v2058 = vadd.f32 %v2057, 0.05243302
    %v2059 = vmul.f32 %v2052, %v2058
    %v2060 = vadd.f32 %v2059, 0.18741608
    %v2061 = vmul.f32 %v2052, %v2060
    %v2062 = vadd.f32 %v2061, 1.1283791
    %v2063 = vmul.f32 %v849, %v2062
    %v2064 = vmul.f32 %v2052, 3.8918573e-05
    %v2065 = vadd.f32 %v2064, 0.001143296
    %v2066 = vmul.f32 %v2052, %v2065
    %v2067 = vadd.f32 %v2066, 0.014752088
    %v2068 = vmul.f32 %v2052, %v2067
    %v2069 = vadd.f32 %v2068, 0.112945676
    %v2070 = vmul.f32 %v2052, %v2069
    %v2071 = vadd.f32 %v2070, 0.4994258
    %v2072 = vmul.f32 %v2052, %v2071
    %v2073 = vadd.f32 %v2072, 1.0
    %v2074 = vrcp.pop %v2073
    %v2075 = vmul.f32 %v2073, %v2074
    %v2076 = vsub.f32 1.0, %v2075
    %v2077 = vmul.f32 %v2074, %v2076
    %v2078 = vadd.f32 %v2074, %v2077
    %vm2079 = vweird.f32 %v2073
    %vm2080 = vweird.f32 %v2074
    %vm2081 = vmor %vm2079, %vm2080
    %v2082 = vsel %vm2081, %v2074, %v2078
    %v2083 = vand.u32 2147483647, %v2073
    %vm2084 = vcmp.eq.f32.partialorder %v2083, 8.507059e+37
    %v2085 = vand.u32 %v2073, 2147483648
    %v2086 = vor.u32 1.1754944e-38, %v2085
    %v2087 = vsel %vm2084, %v2086, %v2082
    %v2088 = vmul.f32 %v2063, %v2087
    %v2089 = vmin.f32 %v2088, 1.0
    %v2090 = vmax.f32 %v2089, -1.0
    %v2091 = vmul.f32 %v850, %v850
    %v2092 = vmin.f32 16.0, %v2091
    %v2093 = vmul.f32 %v2092, 2.1237322e-06
    %v2094 = vadd.f32 %v2093, 0.00028619796
    %v2095 = vmul.f32 %v2092, %v2094
    %v2096 = vadd.f32 %v2095, 0.0036580483
    %v2097 = vmul.f32 %v2092, %v2096
    %v2098 = vadd.f32 %v2097, 0.05243302
    %v2099 = vmul.f32 %v2092, %v2098
    %v2100 = vadd.f32 %v2099, 0.18741608
    %v2101 = vmul.f32 %v2092, %v2100
    %v2102 = vadd.f32 %v2101, 1.1283791
    %v2103 = vmul.f32 %v850, %v2102
    %v2104 = vmul.f32 %v2092, 3.8918573e-05
    %v2105 = vadd.f32 %v2104, 0.001143296
    %v2106 = vmul.f32 %v2092, %v2105
    %v2107 = vadd.f32 %v2106, 0.014752088
    %v2108 = vmul.f32 %v2092, %v2107
    %v2109 = vadd.f32 %v2108, 0.112945676
    %v2110 = vmul.f32 %v2092, %v2109
    %v2111 = vadd.f32 %v2110, 0.4994258
    %v2112 = vmul.f32 %v2092, %v2111
    %v2113 = vadd.f32 %v2112, 1.0
    %v2114 = vrcp.pop %v2113
    %v2115 = vmul.f32 %v2113, %v2114
    %v2116 = vsub.f32 1.0, %v2115
    %v2117 = vmul.f32 %v2114, %v2116
    %v2118 = vadd.f32 %v2114, %v2117
    %vm2119 = vweird.f32 %v2113
    %vm2120 = vweird.f32 %v2114
    %vm2121 = vmor %vm2119, %vm2120
    %v2122 = vsel %vm2121, %v2114, %v2118
    %v2123 = vand.u32 2147483647, %v2113
    %vm2124 = vcmp.eq.f32.partialorder %v2123, 8.507059e+37
    %v2125 = vand.u32 %v2113, 2147483648
    %v2126 = vor.u32 1.1754944e-38, %v2125
    %v2127 = vsel %vm2124, %v2126, %v2122
    %v2128 = vmul.f32 %v2103, %v2127
    %v2129 = vmin.f32 %v2128, 1.0
    %v2130 = vmax.f32 %v2129, -1.0
    %v2131 = vadd.f32 %v890, 1.0
    %v2132 = vadd.f32 %v930, 1.0
    %v2133 = vadd.f32 %v970, 1.0
    %v2134 = vadd.f32 %v1010, 1.0
    %v2135 = vadd.f32 %v1050, 1.0
    %v2136 = vadd.f32 %v1090, 1.0
    %v2137 = vadd.f32 %v1130, 1.0
    %v2138 = vadd.f32 %v1170, 1.0
    %v2139 = vadd.f32 %v1210, 1.0
    %v2140 = vadd.f32 %v1250, 1.0
    %v2141 = vadd.f32 %v1290, 1.0
    %v2142 = vadd.f32 %v1330, 1.0
    %v2143 = vadd.f32 %v1370, 1.0
    %v2144 = vadd.f32 %v1410, 1.0
    %v2145 = vadd.f32 %v1450, 1.0
    %v2146 = vadd.f32 %v1490, 1.0
    %v2147 = vadd.f32 %v1530, 1.0
    %v2148 = vadd.f32 %v1570, 1.0
    %v2149 = vadd.f32 %v1610, 1.0
    %v2150 = vadd.f32 %v1650, 1.0
    %v2151 = vadd.f32 %v1690, 1.0
    %v2152 = vadd.f32 %v1730, 1.0
    %v2153 = vadd.f32 %v1770, 1.0
    %v2154 = vadd.f32 %v1810, 1.0
    %v2155 = vadd.f32 %v1850, 1.0
    %v2156 = vadd.f32 %v1890, 1.0
    %v2157 = vadd.f32 %v1930, 1.0
    %v2158 = vadd.f32 %v1970, 1.0
    %v2159 = vadd.f32 %v2010, 1.0
    %v2160 = vadd.f32 %v2050, 1.0
    %v2161 = vadd.f32 %v2090, 1.0
    %v2162 = vadd.f32 %v2130, 1.0
    %v2163 = vmul.f32 %v787, %v2131
    %v2164 = vmul.f32 %v788, %v2132
    %v2165 = vmul.f32 %v789, %v2133
    %v2166 = vmul.f32 %v790, %v2134
    %v2167 = vmul.f32 %v791, %v2135
    %v2168 = vmul.f32 %v792, %v2136
    %v2169 = vmul.f32 %v793, %v2137
    %v2170 = vmul.f32 %v794, %v2138
    %v2171 = vmul.f32 %v795, %v2139
    %v2172 = vmul.f32 %v796, %v2140
    %v2173 = vmul.f32 %v797, %v2141
    %v2174 = vmul.f32 %v798, %v2142
    %v2175 = vmul.f32 %v799, %v2143
    %v2176 = vmul.f32 %v800, %v2144
    %v2177 = vmul.f32 %v801, %v2145
    %v2178 = vmul.f32 %v802, %v2146
    %v2179 = vmul.f32 %v803, %v2147
    %v2180 = vmul.f32 %v804, %v2148
    %v2181 = vmul.f32 %v805, %v2149
    %v2182 = vmul.f32 %v806, %v2150
    %v2183 = vmul.f32 %v807, %v2151
    %v2184 = vmul.f32 %v808, %v2152
    %v2185 = vmul.f32 %v809, %v2153
    %v2186 = vmul.f32 %v810, %v2154
    %v2187 = vmul.f32 %v811, %v2155
    %v2188 = vmul.f32 %v812, %v2156
    %v2189 = vmul.f32 %v813, %v2157
    %v2190 = vmul.f32 %v814, %v2158
    %v2191 = vmul.f32 %v815, %v2159
    %v2192 = vmul.f32 %v816, %v2160
    %v2193 = vmul.f32 %v817, %v2161
    %v2194 = vmul.f32 %v818, %v2162
    %v2195 = vld [vmem:[#allocation3] sm:$0xff]
    %v2196 = vld [vmem:[#allocation3 + $0x8] sm:$0xff]
    %v2197 = vld [vmem:[#allocation3 + $0x10] sm:$0xff]
    %v2198 = vld [vmem:[#allocation3 + $0x18] sm:$0xff]
    %v2199 = vld [vmem:[#allocation3 + $0x20] sm:$0xff]
    %v2200 = vld [vmem:[#allocation3 + $0x28] sm:$0xff]
    %v2201 = vld [vmem:[#allocation3 + $0x30] sm:$0xff]
    %v2202 = vld [vmem:[#allocation3 + $0x38] sm:$0xff]
    %v2203 = vld [vmem:[#allocation3 + $0x40] sm:$0xff]
    %v2204 = vld [vmem:[#allocation3 + $0x48] sm:$0xff]
    %v2205 = vld [vmem:[#allocation3 + $0x50] sm:$0xff]
    %v2206 = vld [vmem:[#allocation3 + $0x58] sm:$0xff]
    %v2207 = vld [vmem:[#allocation3 + $0x60] sm:$0xff]
    %v2208 = vld [vmem:[#allocation3 + $0x68] sm:$0xff]
    %v2209 = vld [vmem:[#allocation3 + $0x70] sm:$0xff]
    %v2210 = vld [vmem:[#allocation3 + $0x78] sm:$0xff]
    %v2211 = vpack.c.bf16 %v2165, %v2163
    %v2212 = vpack.c.bf16 %v2166, %v2164
    %v2213 = vpack.c.bf16 %v2169, %v2167
    %v2214 = vpack.c.bf16 %v2170, %v2168
    %v2215 = vpack.c.bf16 %v2173, %v2171
    %v2216 = vpack.c.bf16 %v2174, %v2172
    %v2217 = vpack.c.bf16 %v2177, %v2175
    %v2218 = vpack.c.bf16 %v2178, %v2176
    %v2219 = vpack.c.bf16 %v2181, %v2179
    %v2220 = vpack.c.bf16 %v2182, %v2180
    %v2221 = vpack.c.bf16 %v2185, %v2183
    %v2222 = vpack.c.bf16 %v2186, %v2184
    %v2223 = vpack.c.bf16 %v2189, %v2187
    %v2224 = vpack.c.bf16 %v2190, %v2188
    %v2225 = vpack.c.bf16 %v2193, %v2191
    %v2226 = vpack.c.bf16 %v2194, %v2192
    %v2227 = vld [vmem:[#allocation10] sm:$0xf]
    %v2228 = vld [vmem:[#allocation10 + $0x4] sm:$0xf]
    %v2229 = vld [vmem:[#allocation10 + $0x8] sm:$0xf]
    %v2230 = vld [vmem:[#allocation10 + $0xc] sm:$0xf]
    %v2231 = vld [vmem:[#allocation10 + $0x10] sm:$0xf]
    %v2232 = vld [vmem:[#allocation10 + $0x14] sm:$0xf]
    %v2233 = vld [vmem:[#allocation10 + $0x18] sm:$0xf]
    %v2234 = vld [vmem:[#allocation10 + $0x1c] sm:$0xf]
    %v2235 = vld [vmem:[#allocation10 + $0x20] sm:$0xf]
    %v2236 = vld [vmem:[#allocation10 + $0x24] sm:$0xf]
    %v2237 = vld [vmem:[#allocation10 + $0x28] sm:$0xf]
    %v2238 = vld [vmem:[#allocation10 + $0x2c] sm:$0xf]
    %v2239 = vld [vmem:[#allocation10 + $0x30] sm:$0xf]
    %v2240 = vld [vmem:[#allocation10 + $0x34] sm:$0xf]
    %v2241 = vld [vmem:[#allocation10 + $0x38] sm:$0xf]
    %v2242 = vld [vmem:[#allocation10 + $0x3c] sm:$0xf]
    %v2243 = vld [vmem:[#allocation10 + $0x40] sm:$0xf]
    %v2244 = vld [vmem:[#allocation10 + $0x44] sm:$0xf]
    %v2245 = vld [vmem:[#allocation10 + $0x48] sm:$0xf]
    %v2246 = vld [vmem:[#allocation10 + $0x4c] sm:$0xf]
    %v2247 = vld [vmem:[#allocation10 + $0x50] sm:$0xf]
    %v2248 = vld [vmem:[#allocation10 + $0x54] sm:$0xf]
    %v2249 = vld [vmem:[#allocation10 + $0x58] sm:$0xf]
    %v2250 = vld [vmem:[#allocation10 + $0x5c] sm:$0xf]
    %v2251 = vld [vmem:[#allocation10 + $0x60] sm:$0xf]
    %v2252 = vld [vmem:[#allocation10 + $0x64] sm:$0xf]
    %v2253 = vld [vmem:[#allocation10 + $0x68] sm:$0xf]
    %v2254 = vld [vmem:[#allocation10 + $0x6c] sm:$0xf]
    %v2255 = vld [vmem:[#allocation10 + $0x70] sm:$0xf]
    %v2256 = vld [vmem:[#allocation10 + $0x74] sm:$0xf]
    %v2257 = vld [vmem:[#allocation10 + $0x78] sm:$0xf]
    %v2258 = vld [vmem:[#allocation10 + $0x7c] sm:$0xf]
    %v2291 = vunpack.c.l.b16 %v2227
    %v2292 = vunpack.c.l.b16 %v2228
    %v2293 = vunpack.c.l.b16 %v2229
    %v2294 = vunpack.c.l.b16 %v2230
    %v2295 = vunpack.c.l.b16 %v2231
    %v2296 = vunpack.c.l.b16 %v2232
    %v2297 = vunpack.c.l.b16 %v2233
    %v2298 = vunpack.c.l.b16 %v2234
    %v2299 = vunpack.c.l.b16 %v2235
    %v2300 = vunpack.c.l.b16 %v2236
    %v2301 = vunpack.c.l.b16 %v2237
    %v2302 = vunpack.c.l.b16 %v2238
    %v2303 = vunpack.c.l.b16 %v2239
    %v2304 = vunpack.c.l.b16 %v2240
    %v2305 = vunpack.c.l.b16 %v2241
    %v2306 = vunpack.c.l.b16 %v2242
    %v2307 = vunpack.c.l.b16 %v2243
    %v2308 = vunpack.c.l.b16 %v2244
    %v2309 = vunpack.c.l.b16 %v2245
    %v2310 = vunpack.c.l.b16 %v2246
    %v2311 = vunpack.c.l.b16 %v2247
    %v2312 = vunpack.c.l.b16 %v2248
    %v2313 = vunpack.c.l.b16 %v2249
    %v2314 = vunpack.c.l.b16 %v2250
    %v2315 = vunpack.c.l.b16 %v2251
    %v2316 = vunpack.c.l.b16 %v2252
    %v2317 = vunpack.c.l.b16 %v2253
    %v2318 = vunpack.c.l.b16 %v2254
    %v2319 = vunpack.c.l.b16 %v2255
    %v2320 = vunpack.c.l.b16 %v2256
    %v2321 = vunpack.c.l.b16 %v2257
    %v2322 = vunpack.c.l.b16 %v2258
    %v2323 = vpack.c.b16 %v2292, %v2291
    %v2324 = vpack.c.b16 %v2294, %v2293
    %v2325 = vpack.c.b16 %v2296, %v2295
    %v2326 = vpack.c.b16 %v2298, %v2297
    %v2327 = vpack.c.b16 %v2300, %v2299
    %v2328 = vpack.c.b16 %v2302, %v2301
    %v2329 = vpack.c.b16 %v2304, %v2303
    %v2330 = vpack.c.b16 %v2306, %v2305
    %v2331 = vpack.c.b16 %v2308, %v2307
    %v2332 = vpack.c.b16 %v2310, %v2309
    %v2333 = vpack.c.b16 %v2312, %v2311
    %v2334 = vpack.c.b16 %v2314, %v2313
    %v2335 = vpack.c.b16 %v2316, %v2315
    %v2336 = vpack.c.b16 %v2318, %v2317
    %v2337 = vpack.c.b16 %v2320, %v2319
    %v2338 = vpack.c.b16 %v2322, %v2321
    %2355 = vmatpush.bf16.msra.mxu0 %v2330
    %2356 = vmatpush.bf16.msra.mxu0 %v2329
    %2357 = vmatpush.bf16.msra.mxu0 %v2328
    %2358 = vmatpush.bf16.msra.mxu0 %v2327
    %2359 = vmatpush.bf16.msra.mxu0 %v2326
    %2360 = vmatpush.bf16.msra.mxu0 %v2325
    %2361 = vmatpush.bf16.msra.mxu0 %v2324
    %2362 = vmatpush.bf16.msra.mxu0 %v2323
    %2363 = vmatmul.bf16.gmra.mxu0 %v2211
    %v2364 = vpop.f32.mrf.mxu0
    %v2365 = vadd.f32 0.0, %v2364
    %v2366 = vpop.f32.mrf.mxu0
    %v2367 = vadd.f32 0.0, %v2366
    %2368 = vmatmul.bf16.gmra.mxu0 %v2213
    %v2369 = vpop.f32.mrf.mxu0
    %v2370 = vadd.f32 0.0, %v2369
    %v2371 = vpop.f32.mrf.mxu0
    %v2372 = vadd.f32 0.0, %v2371
    %2373 = vmatmul.bf16.gmra.mxu0 %v2215
    %v2374 = vpop.f32.mrf.mxu0
    %v2375 = vadd.f32 0.0, %v2374
    %v2376 = vpop.f32.mrf.mxu0
    %v2377 = vadd.f32 0.0, %v2376
    %2378 = vmatmul.bf16.gmra.mxu0 %v2217
    %v2379 = vpop.f32.mrf.mxu0
    %v2380 = vadd.f32 0.0, %v2379
    %v2381 = vpop.f32.mrf.mxu0
    %v2382 = vadd.f32 0.0, %v2381
    %2383 = vmatmul.bf16.gmra.mxu0 %v2219
    %v2384 = vpop.f32.mrf.mxu0
    %v2385 = vadd.f32 0.0, %v2384
    %v2386 = vpop.f32.mrf.mxu0
    %v2387 = vadd.f32 0.0, %v2386
    %2388 = vmatmul.bf16.gmra.mxu0 %v2221
    %v2389 = vpop.f32.mrf.mxu0
    %v2390 = vadd.f32 0.0, %v2389
    %v2391 = vpop.f32.mrf.mxu0
    %v2392 = vadd.f32 0.0, %v2391
    %2393 = vmatmul.bf16.gmra.mxu0 %v2223
    %v2394 = vpop.f32.mrf.mxu0
    %v2395 = vadd.f32 0.0, %v2394
    %v2396 = vpop.f32.mrf.mxu0
    %v2397 = vadd.f32 0.0, %v2396
    %2398 = vmatmul.bf16.gmra.mxu0 %v2225
    %v2399 = vpop.f32.mrf.mxu0
    %v2400 = vadd.f32 0.0, %v2399
    %v2401 = vpop.f32.mrf.mxu0
    %v2402 = vadd.f32 0.0, %v2401
    %2403 = vdwg.mxu0
    %2404 = vmatpush.bf16.msra.mxu0 %v2338
    %2405 = vmatpush.bf16.msra.mxu0 %v2337
    %2406 = vmatpush.bf16.msra.mxu0 %v2336
    %2407 = vmatpush.bf16.msra.mxu0 %v2335
    %2408 = vmatpush.bf16.msra.mxu0 %v2334
    %2409 = vmatpush.bf16.msra.mxu0 %v2333
    %2410 = vmatpush.bf16.msra.mxu0 %v2332
    %2411 = vmatpush.bf16.msra.mxu0 %v2331
    %2412 = vmatmul.bf16.gmra.mxu0 %v2212
    %v2413 = vpop.f32.mrf.mxu0
    %v2414 = vadd.f32 %v2365, %v2413
    %v2415 = vpop.f32.mrf.mxu0
    %v2416 = vadd.f32 %v2367, %v2415
    %2417 = vmatmul.bf16.gmra.mxu0 %v2214
    %v2418 = vpop.f32.mrf.mxu0
    %v2419 = vadd.f32 %v2370, %v2418
    %v2420 = vpop.f32.mrf.mxu0
    %v2421 = vadd.f32 %v2372, %v2420
    %2422 = vmatmul.bf16.gmra.mxu0 %v2216
    %v2423 = vpop.f32.mrf.mxu0
    %v2424 = vadd.f32 %v2375, %v2423
    %v2425 = vpop.f32.mrf.mxu0
    %v2426 = vadd.f32 %v2377, %v2425
    %2427 = vmatmul.bf16.gmra.mxu0 %v2218
    %v2428 = vpop.f32.mrf.mxu0
    %v2429 = vadd.f32 %v2380, %v2428
    %v2430 = vpop.f32.mrf.mxu0
    %v2431 = vadd.f32 %v2382, %v2430
    %2432 = vmatmul.bf16.gmra.mxu0 %v2220
    %v2433 = vpop.f32.mrf.mxu0
    %v2434 = vadd.f32 %v2385, %v2433
    %v2435 = vpop.f32.mrf.mxu0
    %v2436 = vadd.f32 %v2387, %v2435
    %2437 = vmatmul.bf16.gmra.mxu0 %v2222
    %v2438 = vpop.f32.mrf.mxu0
    %v2439 = vadd.f32 %v2390, %v2438
    %v2440 = vpop.f32.mrf.mxu0
    %v2441 = vadd.f32 %v2392, %v2440
    %2442 = vmatmul.bf16.gmra.mxu0 %v2224
    %v2443 = vpop.f32.mrf.mxu0
    %v2444 = vadd.f32 %v2395, %v2443
    %v2445 = vpop.f32.mrf.mxu0
    %v2446 = vadd.f32 %v2397, %v2445
    %2447 = vmatmul.bf16.gmra.mxu0 %v2226
    %v2448 = vpop.f32.mrf.mxu0
    %v2449 = vadd.f32 %v2400, %v2448
    %v2450 = vpop.f32.mrf.mxu0
    %v2451 = vadd.f32 %v2402, %v2450
    %2452 = vdwg.mxu0
    %v2453 = vadd.f32 %v2195, %v2414
    %v2454 = vadd.f32 %v2196, %v2416
    %v2455 = vadd.f32 %v2197, %v2419
    %v2456 = vadd.f32 %v2198, %v2421
    %v2457 = vadd.f32 %v2199, %v2424
    %v2458 = vadd.f32 %v2200, %v2426
    %v2459 = vadd.f32 %v2201, %v2429
    %v2460 = vadd.f32 %v2202, %v2431
    %v2461 = vadd.f32 %v2203, %v2434
    %v2462 = vadd.f32 %v2204, %v2436
    %v2463 = vadd.f32 %v2205, %v2439
    %v2464 = vadd.f32 %v2206, %v2441
    %v2465 = vadd.f32 %v2207, %v2444
    %v2466 = vadd.f32 %v2208, %v2446
    %v2467 = vadd.f32 %v2209, %v2449
    %v2468 = vadd.f32 %v2210, %v2451
    %2469 = vst [vmem:[#allocation3] sm:$0xff] %v2453
    %2470 = vst [vmem:[#allocation3 + $0x8] sm:$0xff] %v2454
    %2471 = vst [vmem:[#allocation3 + $0x10] sm:$0xff] %v2455
    %2472 = vst [vmem:[#allocation3 + $0x18] sm:$0xff] %v2456
    %2473 = vst [vmem:[#allocation3 + $0x20] sm:$0xff] %v2457
    %2474 = vst [vmem:[#allocation3 + $0x28] sm:$0xff] %v2458
    %2475 = vst [vmem:[#allocation3 + $0x30] sm:$0xff] %v2459
    %2476 = vst [vmem:[#allocation3 + $0x38] sm:$0xff] %v2460
    %2477 = vst [vmem:[#allocation3 + $0x40] sm:$0xff] %v2461
    %2478 = vst [vmem:[#allocation3 + $0x48] sm:$0xff] %v2462
    %2479 = vst [vmem:[#allocation3 + $0x50] sm:$0xff] %v2463
    %2480 = vst [vmem:[#allocation3 + $0x58] sm:$0xff] %v2464
    %2481 = vst [vmem:[#allocation3 + $0x60] sm:$0xff] %v2465
    %2482 = vst [vmem:[#allocation3 + $0x68] sm:$0xff] %v2466
    %2483 = vst [vmem:[#allocation3 + $0x70] sm:$0xff] %v2467
    %2484 = vst [vmem:[#allocation3 + $0x78] sm:$0xff] %v2468
    // Predicated region
    $region50: #{tpu_custom_call.1} parent=1 // pred_check
      %p2485 = pneg %p88
    $region51: #{tpu_custom_call.1} parent=1 // pred_check_branch
      %2487 = sbr.rel (%p2485) target = $region53
    $region52: #{tpu_custom_call.1} parent=1 // pred_region
      %v2488 = vld [vmem:[#allocation3] sm:$0xff]
      %v2489 = vld [vmem:[#allocation3 + $0x8] sm:$0xff]
      %v2490 = vld [vmem:[#allocation3 + $0x10] sm:$0xff]
      %v2491 = vld [vmem:[#allocation3 + $0x18] sm:$0xff]
      %v2492 = vld [vmem:[#allocation3 + $0x20] sm:$0xff]
      %v2493 = vld [vmem:[#allocation3 + $0x28] sm:$0xff]
      %v2494 = vld [vmem:[#allocation3 + $0x30] sm:$0xff]
      %v2495 = vld [vmem:[#allocation3 + $0x38] sm:$0xff]
      %v2496 = vld [vmem:[#allocation3 + $0x40] sm:$0xff]
      %v2497 = vld [vmem:[#allocation3 + $0x48] sm:$0xff]
      %v2498 = vld [vmem:[#allocation3 + $0x50] sm:$0xff]
      %v2499 = vld [vmem:[#allocation3 + $0x58] sm:$0xff]
      %v2500 = vld [vmem:[#allocation3 + $0x60] sm:$0xff]
      %v2501 = vld [vmem:[#allocation3 + $0x68] sm:$0xff]
      %v2502 = vld [vmem:[#allocation3 + $0x70] sm:$0xff]
      %v2503 = vld [vmem:[#allocation3 + $0x78] sm:$0xff]
      %v2504 = vld [vmem:[%s6] sm:$0x1]
      %v2506 = vperm.slane %v2504, 0
      %v2508 = vadd.f32 %v2488, %v2506
      %v2509 = vadd.f32 %v2489, %v2506
      %v2510 = vadd.f32 %v2490, %v2506
      %v2511 = vadd.f32 %v2491, %v2506
      %v2512 = vadd.f32 %v2492, %v2506
      %v2513 = vadd.f32 %v2493, %v2506
      %v2514 = vadd.f32 %v2494, %v2506
      %v2515 = vadd.f32 %v2495, %v2506
      %v2516 = vadd.f32 %v2496, %v2506
      %v2517 = vadd.f32 %v2497, %v2506
      %v2518 = vadd.f32 %v2498, %v2506
      %v2519 = vadd.f32 %v2499, %v2506
      %v2520 = vadd.f32 %v2500, %v2506
      %v2521 = vadd.f32 %v2501, %v2506
      %v2522 = vadd.f32 %v2502, %v2506
      %v2523 = vadd.f32 %v2503, %v2506
      %2524 = vst [vmem:[#allocation12] sm:$0xff] %v2508
      %2525 = vst [vmem:[#allocation12 + $0x8] sm:$0xff] %v2509
      %2526 = vst [vmem:[#allocation12 + $0x10] sm:$0xff] %v2510
      %2527 = vst [vmem:[#allocation12 + $0x18] sm:$0xff] %v2511
      %2528 = vst [vmem:[#allocation12 + $0x20] sm:$0xff] %v2512
      %2529 = vst [vmem:[#allocation12 + $0x28] sm:$0xff] %v2513
      %2530 = vst [vmem:[#allocation12 + $0x30] sm:$0xff] %v2514
      %2531 = vst [vmem:[#allocation12 + $0x38] sm:$0xff] %v2515
      %2532 = vst [vmem:[#allocation12 + $0x40] sm:$0xff] %v2516
      %2533 = vst [vmem:[#allocation12 + $0x48] sm:$0xff] %v2517
      %2534 = vst [vmem:[#allocation12 + $0x50] sm:$0xff] %v2518
      %2535 = vst [vmem:[#allocation12 + $0x58] sm:$0xff] %v2519
      %2536 = vst [vmem:[#allocation12 + $0x60] sm:$0xff] %v2520
      %2537 = vst [vmem:[#allocation12 + $0x68] sm:$0xff] %v2521
      %2538 = vst [vmem:[#allocation12 + $0x70] sm:$0xff] %v2522
      %2539 = vst [vmem:[#allocation12 + $0x78] sm:$0xff] %v2523
    $region53: #{tpu_custom_call.1} parent=1 // pred_fallthru
      _
    // Predicated region
    $region54: #{tpu_custom_call.1} parent=1 // pred_check
      _
    $region55: #{tpu_custom_call.1} parent=1 // pred_check_branch
      %2541 = sbr.rel (0) target = $region57
    $region56: #{tpu_custom_call.1} parent=1 // pred_region
      %2543 = vsyncadd [#allocation6], 0
      %s2544 = sshll.u32 [#allocation12], 4
      %s2545 = int_to_ptr.vmem [resolvable:$true] %s2544
      %s2546 = sshll.u32 %s7, 4
      %s2547 = int_to_ptr.hbm [resolvable:$true] %s2546
      %2552 = dma.vmem_to_hbm [thread:$0]  %s2545, 2048, %s2547, [#allocation6], 128, 128, 8
    $region57: #{tpu_custom_call.1} parent=1 // pred_fallthru
      _
    // Predicated region
    $region58: #{tpu_custom_call.1} parent=1 // pred_check
      _
    $region59: #{tpu_custom_call.1} parent=1 // pred_check_branch
      %2554 = sbr.rel (0) target = $region61
    $region60: #{tpu_custom_call.1} parent=1 // pred_region
      %2556 = dma.done [#allocation6], 2048
    $region61: #{tpu_custom_call.1} parent=1 // pred_fallthru
      _
    %2557 = vsyncpa [#allocation5], 1
    %2558 = vsyncpa [#allocation8], 1
    %2559 = vsyncpa [#allocation11], 1
    %2560 = vsyncpa [#allocation6], 1

</llo_original>
